<compile_context>
chip_gen: v7x
topology: tpu7x:2x2x1
jax: 0.10.0
libtpu: 0.0.40
codegen_flags: <defaults>
</compile_context>

<pallas_src>
import functools
import math

import jax
import jax.numpy as jnp
from jax import lax
from jax.experimental import pallas as pl
from jax.experimental.pallas import tpu as pltpu


def _self_attn_kernel(qs_ref, ks_ref, vs_ref,
                      wq_ref, wk_ref, wv_ref,
                      bq_ref, bk_ref, bv_ref,
                      *out_and_scratch,
                      scale, num_heads, head_dim, compute_dtype, store_att):
    f32 = jnp.float32
    if store_att:
        ctx_ref, att_ref, k_cache, v_cache, ctx_acc = out_and_scratch
    else:
        ctx_ref, k_cache, v_cache, ctx_acc = out_and_scratch
        att_ref = None

    # --- K/V projection, hoisted out of the Lq-tile loop -------------------
    # The Lq-tile grid axis is the inner, sequential axis, so the projected
    # K/V for this batch element are computed once (first query tile) and
    # stay valid in VMEM scratch for every following tile.
    @pl.when(pl.program_id(1) == 0)
    def _project_kv():
        k = jnp.dot(ks_ref[0], wk_ref[...], preferred_element_type=f32) + bk_ref[...]
        v = jnp.dot(vs_ref[0], wv_ref[...], preferred_element_type=f32) + bv_ref[...]
        k_cache[...] = k.astype(k_cache.dtype)
        v_cache[...] = v.astype(v_cache.dtype)

    # --- Q projection for this query tile (full D width on the MXU) --------
    q = jnp.dot(qs_ref[0], wq_ref[...], preferred_element_type=f32) + bq_ref[...]
    # Scale q (TLq x D) instead of the (TLq, H*L) scores: fewer VPU multiplies.
    q = (q * scale).astype(compute_dtype)

    k = k_cache[...]          # (L, D) in compute_dtype
    v = v_cache[...]          # (L, D) in compute_dtype

    # Contract last axes directly (no explicit K transpose / XLU pass).
    contract_last = (((1,), (1,)), ((), ()))

    for h in range(num_heads):                       # static unroll over heads
        sl = slice(h * head_dim, (h + 1) * head_dim)
        s = lax.dot_general(q[:, sl], k[:, sl], contract_last,
                            preferred_element_type=f32)           # (TLq, L)
        # Numerically stable softmax, all elementwise math in f32.
        s = s - jnp.max(s, axis=-1, keepdims=True)
        e = jnp.exp(s)
        inv = pl.reciprocal(jnp.sum(e, axis=-1, keepdims=True))   # exact
        p = e * inv

        if store_att:
            # Pre-dropout attention map (matches torch att_map).
            att_ref[0, h] = p.astype(att_ref.dtype)

        # Per-head write into the f32 context scratch (no concat, bounded
        # live ranges); PV matmul accumulates in f32.
        ctx_acc[:, sl] = jnp.dot(p.astype(compute_dtype), v[:, sl],
                                 preferred_element_type=f32)

    # One lane-dense cast + store of the whole (TLq, D) slab.
    ctx_ref[0] = ctx_acc[...].astype(ctx_ref.dtype)


def _default_tiling():
    """Generation-aware (lq_tile, vmem_limit_bytes) defaults."""
    try:
        kind = jax.devices()[0].device_kind.lower()
    except Exception:  # pragma: no cover
        kind = ""
    if "v7" in kind:
        # 64 MiB physical VMEM: smaller tile, leave headroom for compiler scratch.
        return 256, 56 * 1024 * 1024
    if "v5" in kind or "v6" in kind:
        # 128 MiB physical VMEM: bigger tile amortizes per-step pipeline overhead.
        return 512, 96 * 1024 * 1024
    return 256, 48 * 1024 * 1024


def bert_self_attention(query_states, key_states, value_states, params,
                        num_heads, *, lq_tile=None,
                        compute_dtype=jnp.bfloat16, att_dtype=jnp.bfloat16,
                        return_att_map=True, vmem_limit_bytes=None):
    """Pallas implementation of BertSelfAttention.forward.

    Args:
      query_states: (N, Lq, D) float32
      key_states:   (N, L,  D) float32
      value_states: (N, L,  D) float32
      params: dict with Wq, Wk, Wv of shape (D, D) and bq, bk, bv of shape (D,)
              (projection is x @ W + b).
      num_heads: H, with D % H == 0.
      lq_tile: query-sequence tile size (default is generation-specific).
      compute_dtype: dtype fed to the MXU matmuls (f32 accumulation regardless).
      att_dtype: dtype of the returned attention map.
      return_att_map: if False, the (N, H, Lq, L) map is not materialized.

    Returns:
      (context_layer, att_map) with shapes (N, Lq, D) and (N, H, Lq, L)
      (att_map is None when return_att_map=False).
    """
    N, Lq, D = query_states.shape
    _, L, _ = key_states.shape
    H = num_heads
    if D % H != 0:
        raise ValueError(f"hidden size {D} not a multiple of num heads {H}")
    dh = D // H
    scale = 1.0 / math.sqrt(dh)

    default_tile, default_vmem = _default_tiling()
    if lq_tile is None:
        lq_tile = default_tile
    if vmem_limit_bytes is None:
        vmem_limit_bytes = default_vmem

    # Query tiling: pad Lq up to a tile multiple instead of falling back to a
    # full-Lq block (keeps the per-step score/att footprint bounded).
    if Lq <= lq_tile:
        tlq, lq_pad = Lq, Lq
    else:
        tlq = lq_tile
        lq_pad = ((Lq + tlq - 1) // tlq) * tlq
    n_lq = lq_pad // tlq

    out_dtype = query_states.dtype

    # Pre-cast activations and weights to the MXU compute dtype (halves DMA
    # bytes + resident weight VMEM); biases stay f32 (added to f32 accumulators).
    q_in = query_states.astype(compute_dtype)
    k_in = key_states.astype(compute_dtype)
    v_in = value_states.astype(compute_dtype)
    if lq_pad != Lq:
        q_in = jnp.pad(q_in, ((0, 0), (0, lq_pad - Lq), (0, 0)))

    wq = params["Wq"].astype(compute_dtype)
    wk = params["Wk"].astype(compute_dtype)
    wv = params["Wv"].astype(compute_dtype)
    bq = params["bq"].reshape(1, D).astype(jnp.float32)
    bk = params["bk"].reshape(1, D).astype(jnp.float32)
    bv = params["bv"].reshape(1, D).astype(jnp.float32)

    kernel = functools.partial(_self_attn_kernel, scale=scale, num_heads=H,
                               head_dim=dh, compute_dtype=compute_dtype,
                               store_att=return_att_map)

    ctx_shape = jax.ShapeDtypeStruct((N, lq_pad, D), out_dtype)
    ctx_spec = pl.BlockSpec((1, tlq, D), lambda n, i: (n, i, 0))  # lane-dense out
    if return_att_map:
        out_shape = (ctx_shape,
                     jax.ShapeDtypeStruct((N, H, lq_pad, L), att_dtype))
        out_specs = (ctx_spec,
                     pl.BlockSpec((1, H, tlq, L), lambda n, i: (n, 0, i, 0)))
    else:
        out_shape = ctx_shape
        out_specs = ctx_spec

    in_specs = [
        pl.BlockSpec((1, tlq, D), lambda n, i: (n, i, 0)),   # query tile (streamed)
        pl.BlockSpec((1, L, D), lambda n, i: (n, 0, 0)),     # keys   (per-batch, revisited)
        pl.BlockSpec((1, L, D), lambda n, i: (n, 0, 0)),     # values (per-batch, revisited)
        pl.BlockSpec((D, D), lambda n, i: (0, 0)),           # Wq (DMA once, resident)
        pl.BlockSpec((D, D), lambda n, i: (0, 0)),           # Wk
        pl.BlockSpec((D, D), lambda n, i: (0, 0)),           # Wv
        pl.BlockSpec((1, D), lambda n, i: (0, 0)),           # bq
        pl.BlockSpec((1, D), lambda n, i: (0, 0)),           # bk
        pl.BlockSpec((1, D), lambda n, i: (0, 0)),           # bv
    ]

    scratch_shapes = [
        pltpu.VMEM((L, D), compute_dtype),    # projected K cache (per batch element)
        pltpu.VMEM((L, D), compute_dtype),    # projected V cache
        pltpu.VMEM((tlq, D), jnp.float32),    # per-tile f32 context accumulator
    ]

    result = pl.pallas_call(
        kernel,
        out_shape=out_shape,
        grid=(N, n_lq),
        in_specs=in_specs,
        out_specs=out_specs,
        scratch_shapes=scratch_shapes,
        compiler_params=pltpu.CompilerParams(
            # Batch axis parallel (megacore may split batches across cores);
            # the Lq-tile axis must stay sequential so the per-batch K/V cache
            # computed at i == 0 is valid for all later tiles of that batch.
            dimension_semantics=("parallel", "arbitrary"),
            vmem_limit_bytes=vmem_limit_bytes,
        ),
    )(q_in, k_in, v_in, wq, wk, wv, bq, bk, bv)

    if return_att_map:
        ctx, att = result
    else:
        ctx, att = result, None

    if lq_pad != Lq:
        ctx = ctx[:, :Lq]
        if att is not None:
            att = att[:, :, :Lq]
    return ctx, att


def _reference(query_states, key_states, value_states, params, num_heads):
    """Pure-JAX reference mirroring the PyTorch module."""
    N, Lq, D = query_states.shape
    _, L, _ = key_states.shape
    H = num_heads
    dh = D // H

    def proj(x, W, b):
        return x @ W + b

    def split_heads(x, Lx):
        return jnp.transpose(x.reshape(N, Lx, H, dh), (0, 2, 1, 3))

    q = split_heads(proj(query_states, params["Wq"], params["bq"]), Lq)
    k = split_heads(proj(key_states, params["Wk"], params["bk"]), L)
    v = split_heads(proj(value_states, params["Wv"], params["bv"]), L)

    scores = jnp.einsum("nhqd,nhkd->nhqk", q, k) / math.sqrt(dh)
    probs = jax.nn.softmax(scores, axis=-1)
    ctx = jnp.einsum("nhqk,nhkd->nhqd", probs, v)
    ctx = jnp.transpose(ctx, (0, 2, 1, 3)).reshape(N, Lq, D)
    return ctx, probs


if __name__ == "__main__":
    # Small config: hidden_size=32, num_attention_heads=4, seq=8, batch=2.
    N, Lq, L, D, H = 2, 8, 8, 32, 4

    key = jax.random.PRNGKey(0)
    (k_qs, k_ks, k_vs, k_wq, k_wk, k_wv,
     k_bq, k_bk, k_bv, k_q2) = jax.random.split(key, 10)

    query_states = jax.random.normal(k_qs, (N, Lq, D), dtype=jnp.float32)
    key_states = jax.random.normal(k_ks, (N, L, D), dtype=jnp.float32)
    value_states = jax.random.normal(k_vs, (N, L, D), dtype=jnp.float32)

    init_scale = 0.02
    params = {
        "Wq": init_scale * jax.random.normal(k_wq, (D, D), dtype=jnp.float32),
        "Wk": init_scale * jax.random.normal(k_wk, (D, D), dtype=jnp.float32),
        "Wv": init_scale * jax.random.normal(k_wv, (D, D), dtype=jnp.float32),
        "bq": init_scale * jax.random.normal(k_bq, (D,), dtype=jnp.float32),
        "bk": init_scale * jax.random.normal(k_bk, (D,), dtype=jnp.float32),
        "bv": init_scale * jax.random.normal(k_bv, (D,), dtype=jnp.float32),
    }

    ref_ctx, ref_att = _reference(query_states, key_states, value_states,
                                  params, num_heads=H)

    # 1) Default path: bf16 MXU operands (f32 accumulation), bf16 att_map.
    ctx, att = bert_self_attention(query_states, key_states, value_states,
                                   params, num_heads=H)
    ctx = jax.block_until_ready(ctx)
    att = jax.block_until_ready(att)
    assert ctx.shape == (N, Lq, D)
    assert att.shape == (N, H, Lq, L)
    assert jnp.allclose(ctx.astype(jnp.float32), ref_ctx, rtol=2e-2, atol=2e-2)
    assert jnp.allclose(att.astype(jnp.float32), ref_att, rtol=2e-2, atol=2e-2)

    # 2) f32 path — tight parity with the reference.
    ctx32, att32 = bert_self_attention(query_states, key_states, value_states,
                                       params, num_heads=H,
                                       compute_dtype=jnp.float32,
                                       att_dtype=jnp.float32)
    ctx32 = jax.block_until_ready(ctx32)
    att32 = jax.block_until_ready(att32)
    assert jnp.allclose(ctx32, ref_ctx, rtol=1e-3, atol=1e-3)
    assert jnp.allclose(att32, ref_att, rtol=1e-3, atol=1e-3)

    # 3) Context-only path (attention map not materialized).
    ctx_only, att_none = bert_self_attention(query_states, key_states,
                                             value_states, params, num_heads=H,
                                             return_att_map=False)
    ctx_only = jax.block_until_ready(ctx_only)
    assert att_none is None
    assert jnp.allclose(ctx_only.astype(jnp.float32), ref_ctx,
                        rtol=2e-2, atol=2e-2)

    # 4) Lq tiling + padding path (Lq=10, tile=8 -> padded to 16, two tiles),
    #    exercising the hoisted K/V cache across sequential query tiles.
    Lq2 = 10
    query_states2 = jax.random.normal(k_q2, (N, Lq2, D), dtype=jnp.float32)
    ref_ctx2, ref_att2 = _reference(query_states2, key_states, value_states,
                                    params, num_heads=H)
    ctx2, att2 = bert_self_attention(query_states2, key_states, value_states,
                                     params, num_heads=H, lq_tile=8)
    ctx2 = jax.block_until_ready(ctx2)
    att2 = jax.block_until_ready(att2)
    assert ctx2.shape == (N, Lq2, D)
    assert att2.shape == (N, H, Lq2, L)
    assert jnp.allclose(ctx2.astype(jnp.float32), ref_ctx2, rtol=2e-2, atol=2e-2)
    assert jnp.allclose(att2.astype(jnp.float32), ref_att2, rtol=2e-2, atol=2e-2)

    print("KERNEL_OK")
</pallas_src>

<mosaic_0001>
module attributes {stable_mosaic.version = 11 : i64} {
  func.func @_self_attn_kernel(%arg0: i32, %arg1: i32, %arg2: memref<1x8x32xbf16, #tpu.memory_space<vmem>>, %arg3: memref<1x8x32xbf16, #tpu.memory_space<vmem>>, %arg4: memref<1x8x32xbf16, #tpu.memory_space<vmem>>, %arg5: memref<32x32xbf16, #tpu.memory_space<vmem>>, %arg6: memref<32x32xbf16, #tpu.memory_space<vmem>>, %arg7: memref<32x32xbf16, #tpu.memory_space<vmem>>, %arg8: memref<1x32xf32, #tpu.memory_space<vmem>>, %arg9: memref<1x32xf32, #tpu.memory_space<vmem>>, %arg10: memref<1x32xf32, #tpu.memory_space<vmem>>, %arg11: memref<1x8x32xf32, #tpu.memory_space<vmem>>, %arg12: memref<1x4x8x8xbf16, #tpu.memory_space<vmem>>, %arg13: memref<8x32xbf16, #tpu.memory_space<vmem>>, %arg14: memref<8x32xbf16, #tpu.memory_space<vmem>>, %arg15: memref<8x32xf32, #tpu.memory_space<vmem>>) attributes {dimension_semantics = [#tpu.dimension_semantics<parallel>, #tpu.dimension_semantics<arbitrary>], iteration_bounds = array<i64: 2, 1>, scalar_prefetch = 0 : i64, scratch_operands = 3 : i64, tpu.core_type = #tpu.core_type<tc>, window_params = [{transform_indices = @transform_0, window_bounds = array<i64: 1, 8, 32>}, {transform_indices = @transform_1, window_bounds = array<i64: 1, 8, 32>}, {transform_indices = @transform_2, window_bounds = array<i64: 1, 8, 32>}, {pipeline_mode = #tpu.pipeline_mode<synchronous>, transform_indices = @transform_3, window_bounds = array<i64: 32, 32>}, {pipeline_mode = #tpu.pipeline_mode<synchronous>, transform_indices = @transform_4, window_bounds = array<i64: 32, 32>}, {pipeline_mode = #tpu.pipeline_mode<synchronous>, transform_indices = @transform_5, window_bounds = array<i64: 32, 32>}, {pipeline_mode = #tpu.pipeline_mode<synchronous>, transform_indices = @transform_6, window_bounds = array<i64: 1, 32>}, {pipeline_mode = #tpu.pipeline_mode<synchronous>, transform_indices = @transform_7, window_bounds = array<i64: 1, 32>}, {pipeline_mode = #tpu.pipeline_mode<synchronous>, transform_indices = @transform_8, window_bounds = array<i64: 1, 32>}, {transform_indices = @transform_9, window_bounds = array<i64: 1, 8, 32>}, {transform_indices = @transform_10, window_bounds = array<i64: 1, 4, 8, 8>}]} {
    %c0_i32 = arith.constant 0 : i32
    %0 = arith.cmpi eq, %arg1, %c0_i32 : i32
    %1 = arith.extui %0 : i1 to i32
    %c0_i32_0 = arith.constant 0 : i32
    %2 = arith.cmpi ne, %1, %c0_i32_0 : i32
    scf.if %2 {
      %c0_51 = arith.constant 0 : index
      %c0_52 = arith.constant 0 : index
      %c0_53 = arith.constant 0 : index
      %103 = vector.load %arg3[%c0_51, %c0_52, %c0_53] : memref<1x8x32xbf16, #tpu.memory_space<vmem>>, vector<1x8x32xbf16>
      %104 = vector.shape_cast %103 : vector<1x8x32xbf16> to vector<8x32xbf16>
      %c0_54 = arith.constant 0 : index
      %c0_55 = arith.constant 0 : index
      %105 = vector.load %arg6[%c0_54, %c0_55] : memref<32x32xbf16, #tpu.memory_space<vmem>>, vector<32x32xbf16>
      %cst_56 = arith.constant dense<0.000000e+00> : vector<8x32xf32>
      %106 = tpu.matmul %104, %105, %cst_56 {dimension_numbers = #tpu.dot_dimension_numbers<[1], [0], [0], [1], [0, 0, 1, 1], [], []>} : vector<8x32xbf16>, vector<32x32xbf16>, vector<8x32xf32> -> vector<8x32xf32>
      %c0_57 = arith.constant 0 : index
      %c0_58 = arith.constant 0 : index
      %107 = vector.load %arg9[%c0_57, %c0_58] : memref<1x32xf32, #tpu.memory_space<vmem>>, vector<1x32xf32>
      %108 = vector.broadcast %107 : vector<1x32xf32> to vector<8x32xf32>
      %109 = arith.addf %106, %108 : vector<8x32xf32>
      %c0_59 = arith.constant 0 : index
      %c0_60 = arith.constant 0 : index
      %c0_61 = arith.constant 0 : index
      %110 = vector.load %arg4[%c0_59, %c0_60, %c0_61] : memref<1x8x32xbf16, #tpu.memory_space<vmem>>, vector<1x8x32xbf16>
      %111 = vector.shape_cast %110 : vector<1x8x32xbf16> to vector<8x32xbf16>
      %c0_62 = arith.constant 0 : index
      %c0_63 = arith.constant 0 : index
      %112 = vector.load %arg7[%c0_62, %c0_63] : memref<32x32xbf16, #tpu.memory_space<vmem>>, vector<32x32xbf16>
      %cst_64 = arith.constant dense<0.000000e+00> : vector<8x32xf32>
      %113 = tpu.matmul %111, %112, %cst_64 {dimension_numbers = #tpu.dot_dimension_numbers<[1], [0], [0], [1], [0, 0, 1, 1], [], []>} : vector<8x32xbf16>, vector<32x32xbf16>, vector<8x32xf32> -> vector<8x32xf32>
      %c0_65 = arith.constant 0 : index
      %c0_66 = arith.constant 0 : index
      %114 = vector.load %arg10[%c0_65, %c0_66] : memref<1x32xf32, #tpu.memory_space<vmem>>, vector<1x32xf32>
      %115 = vector.broadcast %114 : vector<1x32xf32> to vector<8x32xf32>
      %116 = arith.addf %113, %115 : vector<8x32xf32>
      %117 = arith.truncf %109 : vector<8x32xf32> to vector<8x32xbf16>
      %c0_67 = arith.constant 0 : index
      %c0_68 = arith.constant 0 : index
      %118 = vector.load %arg13[%c0_67, %c0_68] : memref<8x32xbf16, #tpu.memory_space<vmem>>, vector<8x32xbf16>
      tpu.vector_store %arg13[%c0_67, %c0_68], %117 {strides = array<i32>} : memref<8x32xbf16, #tpu.memory_space<vmem>>, vector<8x32xbf16>,
      %119 = arith.truncf %116 : vector<8x32xf32> to vector<8x32xbf16>
      %c0_69 = arith.constant 0 : index
      %c0_70 = arith.constant 0 : index
      %120 = vector.load %arg14[%c0_69, %c0_70] : memref<8x32xbf16, #tpu.memory_space<vmem>>, vector<8x32xbf16>
      tpu.vector_store %arg14[%c0_69, %c0_70], %119 {strides = array<i32>} : memref<8x32xbf16, #tpu.memory_space<vmem>>, vector<8x32xbf16>,
    } else {
    }
    %c0 = arith.constant 0 : index
    %c0_1 = arith.constant 0 : index
    %c0_2 = arith.constant 0 : index
    %3 = vector.load %arg2[%c0, %c0_1, %c0_2] : memref<1x8x32xbf16, #tpu.memory_space<vmem>>, vector<1x8x32xbf16>
    %4 = vector.shape_cast %3 : vector<1x8x32xbf16> to vector<8x32xbf16>
    %c0_3 = arith.constant 0 : index
    %c0_4 = arith.constant 0 : index
    %5 = vector.load %arg5[%c0_3, %c0_4] : memref<32x32xbf16, #tpu.memory_space<vmem>>, vector<32x32xbf16>
    %cst = arith.constant dense<0.000000e+00> : vector<8x32xf32>
    %6 = tpu.matmul %4, %5, %cst {dimension_numbers = #tpu.dot_dimension_numbers<[1], [0], [0], [1], [0, 0, 1, 1], [], []>} : vector<8x32xbf16>, vector<32x32xbf16>, vector<8x32xf32> -> vector<8x32xf32>
    %c0_5 = arith.constant 0 : index
    %c0_6 = arith.constant 0 : index
    %7 = vector.load %arg8[%c0_5, %c0_6] : memref<1x32xf32, #tpu.memory_space<vmem>>, vector<1x32xf32>
    %8 = vector.broadcast %7 : vector<1x32xf32> to vector<8x32xf32>
    %9 = arith.addf %6, %8 : vector<8x32xf32>
    %cst_7 = arith.constant 0.353553385 : f32
    %10 = vector.broadcast %cst_7 : f32 to vector<8x32xf32>
    %11 = arith.mulf %9, %10 : vector<8x32xf32>
    %12 = arith.truncf %11 : vector<8x32xf32> to vector<8x32xbf16>
    %c0_8 = arith.constant 0 : index
    %c0_9 = arith.constant 0 : index
    %13 = vector.load %arg13[%c0_8, %c0_9] : memref<8x32xbf16, #tpu.memory_space<vmem>>, vector<8x32xbf16>
    %c0_10 = arith.constant 0 : index
    %c0_11 = arith.constant 0 : index
    %14 = vector.load %arg14[%c0_10, %c0_11] : memref<8x32xbf16, #tpu.memory_space<vmem>>, vector<8x32xbf16>
    %15 = vector.extract_strided_slice %12 {offsets = [0, 0], sizes = [8, 8], strides = [1, 1]} : vector<8x32xbf16> to vector<8x8xbf16>
    %16 = vector.extract_strided_slice %13 {offsets = [0, 0], sizes = [8, 8], strides = [1, 1]} : vector<8x32xbf16> to vector<8x8xbf16>
    %cst_12 = arith.constant dense<0.000000e+00> : vector<8x8xf32>
    %17 = tpu.matmul %15, %16, %cst_12 {dimension_numbers = #tpu.dot_dimension_numbers<[1], [1], [0], [0], [0, 0, 1, 0], [], []>} : vector<8x8xbf16>, vector<8x8xbf16>, vector<8x8xf32> -> vector<8x8xf32>
    %cst_13 = arith.constant dense<0xFF800000> : vector<8xf32>
    %18 = vector.multi_reduction <maximumf>, %17, %cst_13 [1] : vector<8x8xf32> to vector<8xf32>
    %19 = vector.shape_cast %18 : vector<8xf32> to vector<8x1xf32>
    %20 = vector.broadcast %19 : vector<8x1xf32> to vector<8x8xf32>
    %21 = arith.subf %17, %20 : vector<8x8xf32>
    %22 = math.exp %21 : vector<8x8xf32>
    %cst_14 = arith.constant dense<0.000000e+00> : vector<8xf32>
    %23 = vector.multi_reduction <add>, %22, %cst_14 [1] : vector<8x8xf32> to vector<8xf32>
    %24 = vector.shape_cast %23 : vector<8xf32> to vector<8x1xf32>
    %25 = tpu.reciprocal %24 : vector<8x1xf32> -> vector<8x1xf32>
    %26 = vector.broadcast %25 : vector<8x1xf32> to vector<8x8xf32>
    %27 = arith.mulf %22, %26 : vector<8x8xf32>
    %28 = arith.truncf %27 : vector<8x8xf32> to vector<8x8xbf16>
    %c0_15 = arith.constant 0 : index
    %c0_16 = arith.constant 0 : index
    %c0_17 = arith.constant 0 : index
    %c0_18 = arith.constant 0 : index
    %29 = vector.load %arg12[%c0_15, %c0_16, %c0_17, %c0_18] : memref<1x4x8x8xbf16, #tpu.memory_space<vmem>>, vector<1x1x8x8xbf16>
    %30 = vector.shape_cast %29 : vector<1x1x8x8xbf16> to vector<8x8xbf16>
    %31 = vector.shape_cast %28 : vector<8x8xbf16> to vector<1x1x8x8xbf16>
    tpu.vector_store %arg12[%c0_15, %c0_16, %c0_17, %c0_18], %31 {strides = array<i32>} : memref<1x4x8x8xbf16, #tpu.memory_space<vmem>>, vector<1x1x8x8xbf16>,
    %32 = arith.truncf %27 : vector<8x8xf32> to vector<8x8xbf16>
    %33 = vector.extract_strided_slice %14 {offsets = [0, 0], sizes = [8, 8], strides = [1, 1]} : vector<8x32xbf16> to vector<8x8xbf16>
    %cst_19 = arith.constant dense<0.000000e+00> : vector<8x8xf32>
    %34 = tpu.matmul %32, %33, %cst_19 {dimension_numbers = #tpu.dot_dimension_numbers<[1], [0], [0], [1], [0, 0, 1, 1], [], []>} : vector<8x8xbf16>, vector<8x8xbf16>, vector<8x8xf32> -> vector<8x8xf32>
    %c0_20 = arith.constant 0 : index
    %c0_21 = arith.constant 0 : index
    %35 = vector.load %arg15[%c0_20, %c0_21] : memref<8x32xf32, #tpu.memory_space<vmem>>, vector<8x8xf32>
    tpu.vector_store %arg15[%c0_20, %c0_21], %34 {strides = array<i32>} : memref<8x32xf32, #tpu.memory_space<vmem>>, vector<8x8xf32>,
    %36 = vector.extract_strided_slice %12 {offsets = [0, 8], sizes = [8, 8], strides = [1, 1]} : vector<8x32xbf16> to vector<8x8xbf16>
    %37 = vector.extract_strided_slice %13 {offsets = [0, 8], sizes = [8, 8], strides = [1, 1]} : vector<8x32xbf16> to vector<8x8xbf16>
    %cst_22 = arith.constant dense<0.000000e+00> : vector<8x8xf32>
    %38 = tpu.matmul %36, %37, %cst_22 {dimension_numbers = #tpu.dot_dimension_numbers<[1], [1], [0], [0], [0, 0, 1, 0], [], []>} : vector<8x8xbf16>, vector<8x8xbf16>, vector<8x8xf32> -> vector<8x8xf32>
    %cst_23 = arith.constant dense<0xFF800000> : vector<8xf32>
    %39 = vector.multi_reduction <maximumf>, %38, %cst_23 [1] : vector<8x8xf32> to vector<8xf32>
    %40 = vector.shape_cast %39 : vector<8xf32> to vector<8x1xf32>
    %41 = vector.broadcast %40 : vector<8x1xf32> to vector<8x8xf32>
    %42 = arith.subf %38, %41 : vector<8x8xf32>
    %43 = math.exp %42 : vector<8x8xf32>
    %cst_24 = arith.constant dense<0.000000e+00> : vector<8xf32>
    %44 = vector.multi_reduction <add>, %43, %cst_24 [1] : vector<8x8xf32> to vector<8xf32>
    %45 = vector.shape_cast %44 : vector<8xf32> to vector<8x1xf32>
    %46 = tpu.reciprocal %45 : vector<8x1xf32> -> vector<8x1xf32>
    %47 = vector.broadcast %46 : vector<8x1xf32> to vector<8x8xf32>
    %48 = arith.mulf %43, %47 : vector<8x8xf32>
    %49 = arith.truncf %48 : vector<8x8xf32> to vector<8x8xbf16>
    %c0_25 = arith.constant 0 : index
    %c1 = arith.constant 1 : index
    %c0_26 = arith.constant 0 : index
    %c0_27 = arith.constant 0 : index
    %50 = vector.load %arg12[%c0_25, %c1, %c0_26, %c0_27] : memref<1x4x8x8xbf16, #tpu.memory_space<vmem>>, vector<1x1x8x8xbf16>
    %51 = vector.shape_cast %50 : vector<1x1x8x8xbf16> to vector<8x8xbf16>
    %52 = vector.shape_cast %49 : vector<8x8xbf16> to vector<1x1x8x8xbf16>
    tpu.vector_store %arg12[%c0_25, %c1, %c0_26, %c0_27], %52 {strides = array<i32>} : memref<1x4x8x8xbf16, #tpu.memory_space<vmem>>, vector<1x1x8x8xbf16>,
    %53 = arith.truncf %48 : vector<8x8xf32> to vector<8x8xbf16>
    %54 = vector.extract_strided_slice %14 {offsets = [0, 8], sizes = [8, 8], strides = [1, 1]} : vector<8x32xbf16> to vector<8x8xbf16>
    %cst_28 = arith.constant dense<0.000000e+00> : vector<8x8xf32>
    %55 = tpu.matmul %53, %54, %cst_28 {dimension_numbers = #tpu.dot_dimension_numbers<[1], [0], [0], [1], [0, 0, 1, 1], [], []>} : vector<8x8xbf16>, vector<8x8xbf16>, vector<8x8xf32> -> vector<8x8xf32>
    %c0_29 = arith.constant 0 : index
    %c8 = arith.constant 8 : index
    %56 = vector.load %arg15[%c0_29, %c8] : memref<8x32xf32, #tpu.memory_space<vmem>>, vector<8x8xf32>
    tpu.vector_store %arg15[%c0_29, %c8], %55 {strides = array<i32>} : memref<8x32xf32, #tpu.memory_space<vmem>>, vector<8x8xf32>,
    %57 = vector.extract_strided_slice %12 {offsets = [0, 16], sizes = [8, 8], strides = [1, 1]} : vector<8x32xbf16> to vector<8x8xbf16>
    %58 = vector.extract_strided_slice %13 {offsets = [0, 16], sizes = [8, 8], strides = [1, 1]} : vector<8x32xbf16> to vector<8x8xbf16>
    %cst_30 = arith.constant dense<0.000000e+00> : vector<8x8xf32>
    %59 = tpu.matmul %57, %58, %cst_30 {dimension_numbers = #tpu.dot_dimension_numbers<[1], [1], [0], [0], [0, 0, 1, 0], [], []>} : vector<8x8xbf16>, vector<8x8xbf16>, vector<8x8xf32> -> vector<8x8xf32>
    %cst_31 = arith.constant dense<0xFF800000> : vector<8xf32>
    %60 = vector.multi_reduction <maximumf>, %59, %cst_31 [1] : vector<8x8xf32> to vector<8xf32>
    %61 = vector.shape_cast %60 : vector<8xf32> to vector<8x1xf32>
    %62 = vector.broadcast %61 : vector<8x1xf32> to vector<8x8xf32>
    %63 = arith.subf %59, %62 : vector<8x8xf32>
    %64 = math.exp %63 : vector<8x8xf32>
    %cst_32 = arith.constant dense<0.000000e+00> : vector<8xf32>
    %65 = vector.multi_reduction <add>, %64, %cst_32 [1] : vector<8x8xf32> to vector<8xf32>
    %66 = vector.shape_cast %65 : vector<8xf32> to vector<8x1xf32>
    %67 = tpu.reciprocal %66 : vector<8x1xf32> -> vector<8x1xf32>
    %68 = vector.broadcast %67 : vector<8x1xf32> to vector<8x8xf32>
    %69 = arith.mulf %64, %68 : vector<8x8xf32>
    %70 = arith.truncf %69 : vector<8x8xf32> to vector<8x8xbf16>
    %c0_33 = arith.constant 0 : index
    %c2 = arith.constant 2 : index
    %c0_34 = arith.constant 0 : index
    %c0_35 = arith.constant 0 : index
    %71 = vector.load %arg12[%c0_33, %c2, %c0_34, %c0_35] : memref<1x4x8x8xbf16, #tpu.memory_space<vmem>>, vector<1x1x8x8xbf16>
    %72 = vector.shape_cast %71 : vector<1x1x8x8xbf16> to vector<8x8xbf16>
    %73 = vector.shape_cast %70 : vector<8x8xbf16> to vector<1x1x8x8xbf16>
    tpu.vector_store %arg12[%c0_33, %c2, %c0_34, %c0_35], %73 {strides = array<i32>} : memref<1x4x8x8xbf16, #tpu.memory_space<vmem>>, vector<1x1x8x8xbf16>,
    %74 = arith.truncf %69 : vector<8x8xf32> to vector<8x8xbf16>
    %75 = vector.extract_strided_slice %14 {offsets = [0, 16], sizes = [8, 8], strides = [1, 1]} : vector<8x32xbf16> to vector<8x8xbf16>
    %cst_36 = arith.constant dense<0.000000e+00> : vector<8x8xf32>
    %76 = tpu.matmul %74, %75, %cst_36 {dimension_numbers = #tpu.dot_dimension_numbers<[1], [0], [0], [1], [0, 0, 1, 1], [], []>} : vector<8x8xbf16>, vector<8x8xbf16>, vector<8x8xf32> -> vector<8x8xf32>
    %c0_37 = arith.constant 0 : index
    %c16 = arith.constant 16 : index
    %77 = vector.load %arg15[%c0_37, %c16] : memref<8x32xf32, #tpu.memory_space<vmem>>, vector<8x8xf32>
    tpu.vector_store %arg15[%c0_37, %c16], %76 {strides = array<i32>} : memref<8x32xf32, #tpu.memory_space<vmem>>, vector<8x8xf32>,
    %78 = vector.extract_strided_slice %12 {offsets = [0, 24], sizes = [8, 8], strides = [1, 1]} : vector<8x32xbf16> to vector<8x8xbf16>
    %79 = vector.extract_strided_slice %13 {offsets = [0, 24], sizes = [8, 8], strides = [1, 1]} : vector<8x32xbf16> to vector<8x8xbf16>
    %cst_38 = arith.constant dense<0.000000e+00> : vector<8x8xf32>
    %80 = tpu.matmul %78, %79, %cst_38 {dimension_numbers = #tpu.dot_dimension_numbers<[1], [1], [0], [0], [0, 0, 1, 0], [], []>} : vector<8x8xbf16>, vector<8x8xbf16>, vector<8x8xf32> -> vector<8x8xf32>
    %cst_39 = arith.constant dense<0xFF800000> : vector<8xf32>
    %81 = vector.multi_reduction <maximumf>, %80, %cst_39 [1] : vector<8x8xf32> to vector<8xf32>
    %82 = vector.shape_cast %81 : vector<8xf32> to vector<8x1xf32>
    %83 = vector.broadcast %82 : vector<8x1xf32> to vector<8x8xf32>
    %84 = arith.subf %80, %83 : vector<8x8xf32>
    %85 = math.exp %84 : vector<8x8xf32>
    %cst_40 = arith.constant dense<0.000000e+00> : vector<8xf32>
    %86 = vector.multi_reduction <add>, %85, %cst_40 [1] : vector<8x8xf32> to vector<8xf32>
    %87 = vector.shape_cast %86 : vector<8xf32> to vector<8x1xf32>
    %88 = tpu.reciprocal %87 : vector<8x1xf32> -> vector<8x1xf32>
    %89 = vector.broadcast %88 : vector<8x1xf32> to vector<8x8xf32>
    %90 = arith.mulf %85, %89 : vector<8x8xf32>
    %91 = arith.truncf %90 : vector<8x8xf32> to vector<8x8xbf16>
    %c0_41 = arith.constant 0 : index
    %c3 = arith.constant 3 : index
    %c0_42 = arith.constant 0 : index
    %c0_43 = arith.constant 0 : index
    %92 = vector.load %arg12[%c0_41, %c3, %c0_42, %c0_43] : memref<1x4x8x8xbf16, #tpu.memory_space<vmem>>, vector<1x1x8x8xbf16>
    %93 = vector.shape_cast %92 : vector<1x1x8x8xbf16> to vector<8x8xbf16>
    %94 = vector.shape_cast %91 : vector<8x8xbf16> to vector<1x1x8x8xbf16>
    tpu.vector_store %arg12[%c0_41, %c3, %c0_42, %c0_43], %94 {strides = array<i32>} : memref<1x4x8x8xbf16, #tpu.memory_space<vmem>>, vector<1x1x8x8xbf16>,
    %95 = arith.truncf %90 : vector<8x8xf32> to vector<8x8xbf16>
    %96 = vector.extract_strided_slice %14 {offsets = [0, 24], sizes = [8, 8], strides = [1, 1]} : vector<8x32xbf16> to vector<8x8xbf16>
    %cst_44 = arith.constant dense<0.000000e+00> : vector<8x8xf32>
    %97 = tpu.matmul %95, %96, %cst_44 {dimension_numbers = #tpu.dot_dimension_numbers<[1], [0], [0], [1], [0, 0, 1, 1], [], []>} : vector<8x8xbf16>, vector<8x8xbf16>, vector<8x8xf32> -> vector<8x8xf32>
    %c0_45 = arith.constant 0 : index
    %c24 = arith.constant 24 : index
    %98 = vector.load %arg15[%c0_45, %c24] : memref<8x32xf32, #tpu.memory_space<vmem>>, vector<8x8xf32>
    tpu.vector_store %arg15[%c0_45, %c24], %97 {strides = array<i32>} : memref<8x32xf32, #tpu.memory_space<vmem>>, vector<8x8xf32>,
    %c0_46 = arith.constant 0 : index
    %c0_47 = arith.constant 0 : index
    %99 = vector.load %arg15[%c0_46, %c0_47] : memref<8x32xf32, #tpu.memory_space<vmem>>, vector<8x32xf32>
    %c0_48 = arith.constant 0 : index
    %c0_49 = arith.constant 0 : index
    %c0_50 = arith.constant 0 : index
    %100 = vector.load %arg11[%c0_48, %c0_49, %c0_50] : memref<1x8x32xf32, #tpu.memory_space<vmem>>, vector<1x8x32xf32>
    %101 = vector.shape_cast %100 : vector<1x8x32xf32> to vector<8x32xf32>
    %102 = vector.shape_cast %99 : vector<8x32xf32> to vector<1x8x32xf32>
    tpu.vector_store %arg11[%c0_48, %c0_49, %c0_50], %102 {strides = array<i32>} : memref<1x8x32xf32, #tpu.memory_space<vmem>>, vector<1x8x32xf32>,
    return
  }
  func.func @transform_0(%arg0: i32, %arg1: i32) -> (i32, i32, i32) {
    %c0_i32 = arith.constant 0 : i32
    %c0_i32_0 = arith.constant 0 : i32
    return %arg0, %arg1, %c0_i32 : i32, i32, i32
  }
  func.func @transform_1(%arg0: i32, %arg1: i32) -> (i32, i32, i32) {
    %c0_i32 = arith.constant 0 : i32
    %c0_i32_0 = arith.constant 0 : i32
    %c0_i32_1 = arith.constant 0 : i32
    return %arg0, %c0_i32, %c0_i32_0 : i32, i32, i32
  }
  func.func @transform_2(%arg0: i32, %arg1: i32) -> (i32, i32, i32) {
    %c0_i32 = arith.constant 0 : i32
    %c0_i32_0 = arith.constant 0 : i32
    %c0_i32_1 = arith.constant 0 : i32
    return %arg0, %c0_i32, %c0_i32_0 : i32, i32, i32
  }
  func.func @transform_3(%arg0: i32, %arg1: i32) -> (i32, i32) {
    %c0_i32 = arith.constant 0 : i32
    %c0_i32_0 = arith.constant 0 : i32
    %c0_i32_1 = arith.constant 0 : i32
    return %c0_i32, %c0_i32_0 : i32, i32
  }
  func.func @transform_4(%arg0: i32, %arg1: i32) -> (i32, i32) {
    %c0_i32 = arith.constant 0 : i32
    %c0_i32_0 = arith.constant 0 : i32
    %c0_i32_1 = arith.constant 0 : i32
    return %c0_i32, %c0_i32_0 : i32, i32
  }
  func.func @transform_5(%arg0: i32, %arg1: i32) -> (i32, i32) {
    %c0_i32 = arith.constant 0 : i32
    %c0_i32_0 = arith.constant 0 : i32
    %c0_i32_1 = arith.constant 0 : i32
    return %c0_i32, %c0_i32_0 : i32, i32
  }
  func.func @transform_6(%arg0: i32, %arg1: i32) -> (i32, i32) {
    %c0_i32 = arith.constant 0 : i32
    %c0_i32_0 = arith.constant 0 : i32
    %c0_i32_1 = arith.constant 0 : i32
    return %c0_i32, %c0_i32_0 : i32, i32
  }
  func.func @transform_7(%arg0: i32, %arg1: i32) -> (i32, i32) {
    %c0_i32 = arith.constant 0 : i32
    %c0_i32_0 = arith.constant 0 : i32
    %c0_i32_1 = arith.constant 0 : i32
    return %c0_i32, %c0_i32_0 : i32, i32
  }
  func.func @transform_8(%arg0: i32, %arg1: i32) -> (i32, i32) {
    %c0_i32 = arith.constant 0 : i32
    %c0_i32_0 = arith.constant 0 : i32
    %c0_i32_1 = arith.constant 0 : i32
    return %c0_i32, %c0_i32_0 : i32, i32
  }
  func.func @transform_9(%arg0: i32, %arg1: i32) -> (i32, i32, i32) {
    %c0_i32 = arith.constant 0 : i32
    %c0_i32_0 = arith.constant 0 : i32
    return %arg0, %arg1, %c0_i32 : i32, i32, i32
  }
  func.func @transform_10(%arg0: i32, %arg1: i32) -> (i32, i32, i32, i32) {
    %c0_i32 = arith.constant 0 : i32
    %c0_i32_0 = arith.constant 0 : i32
    %c0_i32_1 = arith.constant 0 : i32
    return %arg0, %c0_i32, %arg1, %c0_i32_0 : i32, i32, i32, i32
  }
}

</mosaic_0001>

<llo_original>
// kernel: tpu_custom_call.1
$region0: #{tpu_custom_call.1}
  #allocation0 [shape = 'u32[]', space=smem, size = 0x4, offset = 0x4, fixed_abs, tag = 'smem constant byte address 0x4 - core index']
  #allocation1 [shape = 'u32[144,128]{1,0:T(1,128)}', space=vmem, size = 0x12000, scoped, tag = 'internal scratch']
  #allocation2 [shape = 'bf16[8,32]{1,0:T(8,128)(2,1)}', space=vmem, size = 0x800, scoped, tag = 'scratch operand']
  #allocation3 [shape = 'bf16[8,32]{1,0:T(8,128)(2,1)}', space=vmem, size = 0x800, scoped, tag = 'scratch operand']
  #allocation4 [shape = 'f32[8,32]{1,0:T(8,128)}', space=vmem, size = 0x1000, scoped, tag = 'scratch operand']
  %s0 = inlined_call_operand.hbm [shape: bf16[2,8,32], index: 0, kind: input, shape index: {}]
  %s1 = inlined_call_operand.hbm [shape: bf16[2,8,32], index: 1, kind: input, shape index: {}]
  %s2 = inlined_call_operand.hbm [shape: bf16[2,8,32], index: 2, kind: input, shape index: {}]
  %s3 = inlined_call_operand.hbm [shape: bf16[32,32], index: 3, kind: input, shape index: {}]
  %s4 = inlined_call_operand.hbm [shape: bf16[32,32], index: 4, kind: input, shape index: {}]
  %s5 = inlined_call_operand.vmem [shape: bf16[32,32], index: 5, kind: input, shape index: {}]
  %s6 = inlined_call_operand.vmem [shape: f32[1,32], index: 6, kind: input, shape index: {}]
  %s7 = inlined_call_operand.vmem [shape: f32[1,32], index: 7, kind: input, shape index: {}]
  %s8 = inlined_call_operand.vmem [shape: f32[1,32], index: 8, kind: input, shape index: {}]
  %s9 = inlined_call_operand.hbm [shape: f32[2,8,32], index: 9, kind: output, shape index: {0}]
  %s10 = inlined_call_operand.hbm [shape: bf16[2,4,8,8], index: 10, kind: output, shape index: {1}]
  %11 = xla_tuple %s9, %s10
  %s12 = sld [smem:[#allocation0]]
  $region101: #{tpu_custom_call.1} parent=0
    _
  %s14 = ssub.s32 1, %s12
  %s15 = scalar_select 0, %s14, %s12
  $region1: #{tpu_custom_call.1} parent=0
    #allocation5 [shape = 'u8[4096]{0}', space=vmem, size = 0x1000, scoped, tag = 'input window, operand 0']
    #allocation6 [shape = 's32[2]{0}', space=sflag, size = 0x8, scoped, tag = 'scoped memory for tpu_custom_call.1']
    #allocation7 [shape = 's32[2]{0}', space=sflag, size = 0x8, scoped, tag = 'scoped memory for tpu_custom_call.1']
    #allocation8 [shape = 'u8[4096]{0}', space=vmem, size = 0x1000, scoped, tag = 'input window, operand 1']
    #allocation9 [shape = 's32[2]{0}', space=sflag, size = 0x8, scoped, tag = 'scoped memory for tpu_custom_call.1']
    #allocation10 [shape = 'u8[4096]{0}', space=vmem, size = 0x1000, scoped, tag = 'input window, operand 2']
    #allocation11 [shape = 'u8[8192]{0}', space=vmem, size = 0x2000, scoped, tag = 'input window, operand 3, single buffered']
    #allocation12 [shape = 's32[1]{0}', space=sflag, size = 0x4, scoped, tag = 'scoped memory for tpu_custom_call.1']
    #allocation13 [shape = 'u8[8192]{0}', space=vmem, size = 0x2000, scoped, tag = 'input window, operand 4, single buffered']
    #allocation14 [shape = 'u8[8192]{0}', space=vmem, size = 0x2000, scoped, tag = 'output window, operand 0']
    #allocation15 [shape = 'u8[16384]{0}', space=vmem, size = 0x4000, scoped, tag = 'output window, operand 1']
    #allocation16 [shape = 's32[2]{0}', space=sflag, size = 0x8, scoped, tag = 'scoped memory for tpu_custom_call.1']
    %16 = vsyncpa [#allocation6], 0
    %s17 = scalar_lea.sflag [#allocation6], 1
    %18 = vsyncpa %s17, 0
    %19 = vsyncpa [#allocation9], 0
    %s20 = scalar_lea.sflag [#allocation9], 1
    %21 = vsyncpa %s20, 0
    %22 = vsyncpa [#allocation12], 0
    %23 = vsyncpa [#allocation7], 0
    %s24 = scalar_lea.sflag [#allocation7], 1
    %25 = vsyncpa %s24, 0
    %26 = vsyncpa [#allocation16], 0
    %s27 = scalar_lea.sflag [#allocation16], 1
    %28 = vsyncpa %s27, 0
    loop: start=0, step=1, limit=4
    $region2: #{tpu_custom_call.1} parent=1 // loop_pre_header
      _
    $region3: #{tpu_custom_call.1} parent=1 // loop_header
      %s30 = sphi 0, %s34
      %p31 = scmp.ge.s32.totalorder %s30, 4
      %s37 = sphi 0, %s49
      %s38 = sphi 0, %s45
      %s39 = sphi 0, %s37
      %s40 = sphi 0, %s38
      %s41 = sphi 0, %s39
      %s42 = sphi 0, %s40
      %s54 = sphi 0, %s56
      %s57 = sphi 0, %s54
      %s58 = sphi 0, %s57
      %s74 = sphi 0, %s58
      %s80 = sphi 0, %s82
      %s83 = sphi 0, %s80
      %s84 = sphi 0, %s83
      %s100 = sphi 0, %s84
      %s106 = sphi 0, %s108
      %s109 = sphi 0, %s106
      %s110 = sphi 0, %s109
      %s126 = sphi 0, %s110
      %s130 = sphi 0, %s130
      %s132 = sphi 0, %s130
      %s133 = sphi 0, %s132
      %s147 = sphi 0, %s133
      %s151 = sphi 0, %s151
      %s153 = sphi 0, %s151
      %s154 = sphi 0, %s153
      %s168 = sphi 0, %s154
      %s172 = sphi 0, %s172
      %s174 = sphi 0, %s172
      %s175 = sphi 0, %s174
      %s189 = sphi 0, %s175
      %s193 = sphi 0, %s193
      %s195 = sphi 0, %s193
      %s196 = sphi 0, %s195
      %s210 = sphi 0, %s196
      %s214 = sphi 0, %s214
      %s216 = sphi 0, %s214
      %s217 = sphi 0, %s216
      %s231 = sphi 0, %s217
      %s235 = sphi 0, %s235
      %s237 = sphi 0, %s235
      %s238 = sphi 0, %s237
      %s252 = sphi 0, %s238
      %s260 = sphi 0, %s262
      %s263 = sphi 0, %s260
      %s264 = sphi 0, %s263
      %s280 = sphi 0, %s264
      %s288 = sphi 0, %s290
      %s291 = sphi 0, %s288
      %s292 = sphi 0, %s291
      %s308 = sphi 0, %s292
    $region4: #{tpu_custom_call.1} parent=1 // loop_header_branch
      %33 = sbr.rel (%p31) target = $region8
    $region5: #{tpu_custom_call.1} parent=1 // loop_body
      %s35 = ssub.s32 %s30, 1
      %s36 = ssub.s32 %s30, 2
      %s43 = sadd.s32 1, %s38
      %p44 = scmp.ge.s32.totalorder %s43, 1
      %s45 = scalar_select %p44, 0, %s43
      %s46 = sadd.s32 1, %s37
      %s47 = scalar_select %p44, %s46, %s37
      %p48 = scmp.ge.s32.totalorder %s47, 2
      %s49 = scalar_select %p48, 0, %s47
      %s50 = ssub.s32 %s37, %s49
      %s51 = ssub.s32 %s38, %s45
      %s52 = sor.u32 %s50, %s51
      %p53 = scmp.eq.s32.totalorder %s52, 0
      %s55 = sadd.s32 %s54, 1
      %s56 = scalar_select %p53, %s54, %s55
      %p59 = pneg %p53
      %p60 = scmp.eq.s32.totalorder %s30, 1
      %p61 = por %p59, %p60
      %p62 = scmp.ne.s32.totalorder %s54, %s57
      %p63 = scmp.eq.s32.totalorder %s30, 0
      %p64 = por %p62, %p63
      %p65 = scmp.ne.s32.totalorder %s54, %s57
      %p66 = scmp.eq.s32.totalorder %s35, 1
      %p67 = por %p65, %p66
      %p68 = scmp.ne.s32.totalorder %s57, %s58
      %p69 = scmp.eq.s32.totalorder %s35, 0
      %p70 = por %p68, %p69
      %p71 = scmp.ne.s32.totalorder %s57, %s58
      %p72 = scmp.eq.s32.totalorder %s36, 1
      %p73 = por %p71, %p72
      %p75 = scmp.ne.s32.totalorder %s58, %s74
      %p76 = scmp.eq.s32.totalorder %s36, 0
      %p77 = por %p75, %p76
      %s78 = ssub.s32 %s37, %s49
      %p79 = scmp.eq.s32.totalorder %s78, 0
      %s81 = sadd.s32 %s80, 1
      %s82 = scalar_select %p79, %s80, %s81
      %p85 = pneg %p79
      %p86 = scmp.eq.s32.totalorder %s30, 1
      %p87 = por %p85, %p86
      %p88 = scmp.ne.s32.totalorder %s80, %s83
      %p89 = scmp.eq.s32.totalorder %s30, 0
      %p90 = por %p88, %p89
      %p91 = scmp.ne.s32.totalorder %s80, %s83
      %p92 = scmp.eq.s32.totalorder %s35, 1
      %p93 = por %p91, %p92
      %p94 = scmp.ne.s32.totalorder %s83, %s84
      %p95 = scmp.eq.s32.totalorder %s35, 0
      %p96 = por %p94, %p95
      %p97 = scmp.ne.s32.totalorder %s83, %s84
      %p98 = scmp.eq.s32.totalorder %s36, 1
      %p99 = por %p97, %p98
      %p101 = scmp.ne.s32.totalorder %s84, %s100
      %p102 = scmp.eq.s32.totalorder %s36, 0
      %p103 = por %p101, %p102
      %s104 = ssub.s32 %s37, %s49
      %p105 = scmp.eq.s32.totalorder %s104, 0
      %s107 = sadd.s32 %s106, 1
      %s108 = scalar_select %p105, %s106, %s107
      %p111 = pneg %p105
      %p112 = scmp.eq.s32.totalorder %s30, 1
      %p113 = por %p111, %p112
      %p114 = scmp.ne.s32.totalorder %s106, %s109
      %p115 = scmp.eq.s32.totalorder %s30, 0
      %p116 = por %p114, %p115
      %p117 = scmp.ne.s32.totalorder %s106, %s109
      %p118 = scmp.eq.s32.totalorder %s35, 1
      %p119 = por %p117, %p118
      %p120 = scmp.ne.s32.totalorder %s109, %s110
      %p121 = scmp.eq.s32.totalorder %s35, 0
      %p122 = por %p120, %p121
      %p123 = scmp.ne.s32.totalorder %s109, %s110
      %p124 = scmp.eq.s32.totalorder %s36, 1
      %p125 = por %p123, %p124
      %p127 = scmp.ne.s32.totalorder %s110, %s126
      %p128 = scmp.eq.s32.totalorder %s36, 0
      %p129 = por %p127, %p128
      %s131 = sadd.s32 %s130, 1
      %p134 = scmp.eq.s32.totalorder %s30, 1
      %p135 = scmp.ne.s32.totalorder %s130, %s132
      %p136 = scmp.eq.s32.totalorder %s30, 0
      %p137 = por %p135, %p136
      %p138 = scmp.ne.s32.totalorder %s130, %s132
      %p139 = scmp.eq.s32.totalorder %s35, 1
      %p140 = por %p138, %p139
      %p141 = scmp.ne.s32.totalorder %s132, %s133
      %p142 = scmp.eq.s32.totalorder %s35, 0
      %p143 = por %p141, %p142
      %p144 = scmp.ne.s32.totalorder %s132, %s133
      %p145 = scmp.eq.s32.totalorder %s36, 1
      %p146 = por %p144, %p145
      %p148 = scmp.ne.s32.totalorder %s133, %s147
      %p149 = scmp.eq.s32.totalorder %s36, 0
      %p150 = por %p148, %p149
      %s152 = sadd.s32 %s151, 1
      %p155 = scmp.eq.s32.totalorder %s30, 1
      %p156 = scmp.ne.s32.totalorder %s151, %s153
      %p157 = scmp.eq.s32.totalorder %s30, 0
      %p158 = por %p156, %p157
      %p159 = scmp.ne.s32.totalorder %s151, %s153
      %p160 = scmp.eq.s32.totalorder %s35, 1
      %p161 = por %p159, %p160
      %p162 = scmp.ne.s32.totalorder %s153, %s154
      %p163 = scmp.eq.s32.totalorder %s35, 0
      %p164 = por %p162, %p163
      %p165 = scmp.ne.s32.totalorder %s153, %s154
      %p166 = scmp.eq.s32.totalorder %s36, 1
      %p167 = por %p165, %p166
      %p169 = scmp.ne.s32.totalorder %s154, %s168
      %p170 = scmp.eq.s32.totalorder %s36, 0
      %p171 = por %p169, %p170
      %s173 = sadd.s32 %s172, 1
      %p176 = scmp.eq.s32.totalorder %s30, 1
      %p177 = scmp.ne.s32.totalorder %s172, %s174
      %p178 = scmp.eq.s32.totalorder %s30, 0
      %p179 = por %p177, %p178
      %p180 = scmp.ne.s32.totalorder %s172, %s174
      %p181 = scmp.eq.s32.totalorder %s35, 1
      %p182 = por %p180, %p181
      %p183 = scmp.ne.s32.totalorder %s174, %s175
      %p184 = scmp.eq.s32.totalorder %s35, 0
      %p185 = por %p183, %p184
      %p186 = scmp.ne.s32.totalorder %s174, %s175
      %p187 = scmp.eq.s32.totalorder %s36, 1
      %p188 = por %p186, %p187
      %p190 = scmp.ne.s32.totalorder %s175, %s189
      %p191 = scmp.eq.s32.totalorder %s36, 0
      %p192 = por %p190, %p191
      %s194 = sadd.s32 %s193, 1
      %p197 = scmp.eq.s32.totalorder %s30, 1
      %p198 = scmp.ne.s32.totalorder %s193, %s195
      %p199 = scmp.eq.s32.totalorder %s30, 0
      %p200 = por %p198, %p199
      %p201 = scmp.ne.s32.totalorder %s193, %s195
      %p202 = scmp.eq.s32.totalorder %s35, 1
      %p203 = por %p201, %p202
      %p204 = scmp.ne.s32.totalorder %s195, %s196
      %p205 = scmp.eq.s32.totalorder %s35, 0
      %p206 = por %p204, %p205
      %p207 = scmp.ne.s32.totalorder %s195, %s196
      %p208 = scmp.eq.s32.totalorder %s36, 1
      %p209 = por %p207, %p208
      %p211 = scmp.ne.s32.totalorder %s196, %s210
      %p212 = scmp.eq.s32.totalorder %s36, 0
      %p213 = por %p211, %p212
      %s215 = sadd.s32 %s214, 1
      %p218 = scmp.eq.s32.totalorder %s30, 1
      %p219 = scmp.ne.s32.totalorder %s214, %s216
      %p220 = scmp.eq.s32.totalorder %s30, 0
      %p221 = por %p219, %p220
      %p222 = scmp.ne.s32.totalorder %s214, %s216
      %p223 = scmp.eq.s32.totalorder %s35, 1
      %p224 = por %p222, %p223
      %p225 = scmp.ne.s32.totalorder %s216, %s217
      %p226 = scmp.eq.s32.totalorder %s35, 0
      %p227 = por %p225, %p226
      %p228 = scmp.ne.s32.totalorder %s216, %s217
      %p229 = scmp.eq.s32.totalorder %s36, 1
      %p230 = por %p228, %p229
      %p232 = scmp.ne.s32.totalorder %s217, %s231
      %p233 = scmp.eq.s32.totalorder %s36, 0
      %p234 = por %p232, %p233
      %s236 = sadd.s32 %s235, 1
      %p239 = scmp.eq.s32.totalorder %s30, 1
      %p240 = scmp.ne.s32.totalorder %s235, %s237
      %p241 = scmp.eq.s32.totalorder %s30, 0
      %p242 = por %p240, %p241
      %p243 = scmp.ne.s32.totalorder %s235, %s237
      %p244 = scmp.eq.s32.totalorder %s35, 1
      %p245 = por %p243, %p244
      %p246 = scmp.ne.s32.totalorder %s237, %s238
      %p247 = scmp.eq.s32.totalorder %s35, 0
      %p248 = por %p246, %p247
      %p249 = scmp.ne.s32.totalorder %s237, %s238
      %p250 = scmp.eq.s32.totalorder %s36, 1
      %p251 = por %p249, %p250
      %p253 = scmp.ne.s32.totalorder %s238, %s252
      %p254 = scmp.eq.s32.totalorder %s36, 0
      %p255 = por %p253, %p254
      %s256 = ssub.s32 %s37, %s49
      %s257 = ssub.s32 %s38, %s45
      %s258 = sor.u32 %s256, %s257
      %p259 = scmp.eq.s32.totalorder %s258, 0
      %s261 = sadd.s32 %s260, 1
      %s262 = scalar_select %p259, %s260, %s261
      %p265 = pneg %p259
      %p266 = scmp.eq.s32.totalorder %s30, 1
      %p267 = por %p265, %p266
      %p268 = scmp.ne.s32.totalorder %s260, %s263
      %p269 = scmp.eq.s32.totalorder %s30, 0
      %p270 = por %p268, %p269
      %p271 = scmp.ne.s32.totalorder %s260, %s263
      %p272 = scmp.eq.s32.totalorder %s35, 1
      %p273 = por %p271, %p272
      %p274 = scmp.ne.s32.totalorder %s263, %s264
      %p275 = scmp.eq.s32.totalorder %s35, 0
      %p276 = por %p274, %p275
      %p277 = scmp.ne.s32.totalorder %s263, %s264
      %p278 = scmp.eq.s32.totalorder %s36, 1
      %p279 = por %p277, %p278
      %p281 = scmp.ne.s32.totalorder %s264, %s280
      %p282 = scmp.eq.s32.totalorder %s36, 0
      %p283 = por %p281, %p282
      %s284 = ssub.s32 %s37, %s49
      %s285 = ssub.s32 %s38, %s45
      %s286 = sor.u32 %s284, %s285
      %p287 = scmp.eq.s32.totalorder %s286, 0
      %s289 = sadd.s32 %s288, 1
      %s290 = scalar_select %p287, %s288, %s289
      %p293 = pneg %p287
      %p294 = scmp.eq.s32.totalorder %s30, 1
      %p295 = por %p293, %p294
      %p296 = scmp.ne.s32.totalorder %s288, %s291
      %p297 = scmp.eq.s32.totalorder %s30, 0
      %p298 = por %p296, %p297
      %p299 = scmp.ne.s32.totalorder %s288, %s291
      %p300 = scmp.eq.s32.totalorder %s35, 1
      %p301 = por %p299, %p300
      %p302 = scmp.ne.s32.totalorder %s291, %s292
      %p303 = scmp.eq.s32.totalorder %s35, 0
      %p304 = por %p302, %p303
      %p305 = scmp.ne.s32.totalorder %s291, %s292
      %p306 = scmp.eq.s32.totalorder %s36, 1
      %p307 = por %p305, %p306
      %p309 = scmp.ne.s32.totalorder %s292, %s308
      %p310 = scmp.eq.s32.totalorder %s36, 0
      %p311 = por %p309, %p310
      %p312 = scmp.le.s32.totalorder 1, %s30
      %p313 = scmp.lt.s32.totalorder %s30, 3
      %p314 = pnand %p312, %p313
      %p315 = pneg %p314
      // Predicated region
      $region9: #{tpu_custom_call.1} parent=5 // pred_check
        _
      $region10: #{tpu_custom_call.1} parent=5 // pred_check_branch
        %317 = sbr.rel (%p314) target = $region12
      $region11: #{tpu_custom_call.1} parent=5 // pred_region
        %s318 = ssub.s32 %s30, 1
        // Predicated region
        $region13: #{tpu_custom_call.1} parent=11 // pred_check
          %p319 = pneg %p143
        $region14: #{tpu_custom_call.1} parent=11 // pred_check_branch
          %321 = sbr.rel (%p319) target = $region16
        $region15: #{tpu_custom_call.1} parent=11 // pred_region
          %s323 = ssub.s32 256, 256
          %324 = vsyncadd [#allocation12], %s323
          %s325 = sshll.u32 [#allocation11], 4
          %s326 = int_to_ptr.vmem [resolvable:$true] %s325
          %331 = dma.hbm_to_vmem [thread:$0]  %s3, 256, %s326, [#allocation12], 64, 64, 4
        $region16: #{tpu_custom_call.1} parent=11 // pred_fallthru
          _
        // Predicated region
        $region17: #{tpu_custom_call.1} parent=11 // pred_check
          %p332 = pneg %p164
        $region18: #{tpu_custom_call.1} parent=11 // pred_check_branch
          %334 = sbr.rel (%p332) target = $region20
        $region19: #{tpu_custom_call.1} parent=11 // pred_region
          %s336 = ssub.s32 256, 256
          %337 = vsyncadd [#allocation12], %s336
          %s338 = sshll.u32 [#allocation13], 4
          %s339 = int_to_ptr.vmem [resolvable:$true] %s338
          %344 = dma.hbm_to_vmem [thread:$0]  %s4, 256, %s339, [#allocation12], 64, 64, 4
        $region20: #{tpu_custom_call.1} parent=11 // pred_fallthru
          _
        // Predicated region
        $region21: #{tpu_custom_call.1} parent=11 // pred_check
          %p345 = pneg %p185
        $region22: #{tpu_custom_call.1} parent=11 // pred_check_branch
          %347 = sbr.rel (%p345) target = $region24
        $region23: #{tpu_custom_call.1} parent=11 // pred_region
          _
        $region24: #{tpu_custom_call.1} parent=11 // pred_fallthru
          _
        // Predicated region
        $region25: #{tpu_custom_call.1} parent=11 // pred_check
          %p348 = pneg %p206
        $region26: #{tpu_custom_call.1} parent=11 // pred_check_branch
          %350 = sbr.rel (%p348) target = $region28
        $region27: #{tpu_custom_call.1} parent=11 // pred_region
          _
        $region28: #{tpu_custom_call.1} parent=11 // pred_fallthru
          _
        // Predicated region
        $region29: #{tpu_custom_call.1} parent=11 // pred_check
          %p351 = pneg %p227
        $region30: #{tpu_custom_call.1} parent=11 // pred_check_branch
          %353 = sbr.rel (%p351) target = $region32
        $region31: #{tpu_custom_call.1} parent=11 // pred_region
          _
        $region32: #{tpu_custom_call.1} parent=11 // pred_fallthru
          _
        // Predicated region
        $region33: #{tpu_custom_call.1} parent=11 // pred_check
          %p354 = pneg %p248
        $region34: #{tpu_custom_call.1} parent=11 // pred_check_branch
          %356 = sbr.rel (%p354) target = $region36
        $region35: #{tpu_custom_call.1} parent=11 // pred_region
          _
        $region36: #{tpu_custom_call.1} parent=11 // pred_fallthru
          _
      $region12: #{tpu_custom_call.1} parent=5 // pred_fallthru
        _
      %p357 = scmp.lt.s32.totalorder %s30, 2
      // Predicated region
      $region37: #{tpu_custom_call.1} parent=5 // pred_check
        %p358 = pneg %p357
      $region38: #{tpu_custom_call.1} parent=5 // pred_check_branch
        %360 = sbr.rel (%p358) target = $region40
      $region39: #{tpu_custom_call.1} parent=5 // pred_region
        // Predicated region
        $region41: #{tpu_custom_call.1} parent=39 // pred_check
          %p361 = pneg %p64
        $region42: #{tpu_custom_call.1} parent=39 // pred_check_branch
          %363 = sbr.rel (%p361) target = $region44
        $region43: #{tpu_custom_call.1} parent=39 // pred_region
          %s364 = sand.u32 %s54, 1
          %s365 = scalar_lea.sflag [#allocation6], %s364
          %s366 = sand.u32 %s54, 1
          %s367 = smul.addr %s366, 4
          %s368 = scalar_lea.vmem [#allocation5], %s367
          %s370 = ssub.s32 64, 64
          %371 = vsyncadd %s365, %s370
          %s372 = sadd.s32 %s38, %s37
          %s373 = smul.addr %s372, 64
          %s374 = scalar_lea.hbm %s0, %s373
          %s376 = sshll.u32 %s368, 4
          %s377 = int_to_ptr.vmem [resolvable:$true] %s376
          %379 = dma.hbm_to_vmem [thread:$0]  %s374, 64, %s377, %s365
        $region44: #{tpu_custom_call.1} parent=39 // pred_fallthru
          _
        // Predicated region
        $region45: #{tpu_custom_call.1} parent=39 // pred_check
          %p380 = pneg %p90
        $region46: #{tpu_custom_call.1} parent=39 // pred_check_branch
          %382 = sbr.rel (%p380) target = $region48
        $region47: #{tpu_custom_call.1} parent=39 // pred_region
          %s383 = sand.u32 %s30, 1
          %s384 = scalar_lea.sflag [#allocation9], %s383
          %s385 = sand.u32 %s80, 1
          %s386 = smul.addr %s385, 4
          %s387 = scalar_lea.vmem [#allocation8], %s386
          %s389 = ssub.s32 64, 64
          %390 = vsyncadd %s384, %s389
          %s391 = smul.addr %s37, 64
          %s392 = scalar_lea.hbm %s1, %s391
          %s394 = sshll.u32 %s387, 4
          %s395 = int_to_ptr.vmem [resolvable:$true] %s394
          %397 = dma.hbm_to_vmem [thread:$0]  %s392, 64, %s395, %s384
        $region48: #{tpu_custom_call.1} parent=39 // pred_fallthru
          _
        // Predicated region
        $region49: #{tpu_custom_call.1} parent=39 // pred_check
          %p398 = pneg %p116
        $region50: #{tpu_custom_call.1} parent=39 // pred_check_branch
          %400 = sbr.rel (%p398) target = $region52
        $region51: #{tpu_custom_call.1} parent=39 // pred_region
          %s401 = sand.u32 %s30, 1
          %s402 = scalar_lea.sflag [#allocation9], %s401
          %s403 = sand.u32 %s106, 1
          %s404 = smul.addr %s403, 4
          %s405 = scalar_lea.vmem [#allocation10], %s404
          %s407 = ssub.s32 64, 64
          %408 = vsyncadd %s402, %s407
          %s409 = smul.addr %s37, 64
          %s410 = scalar_lea.hbm %s2, %s409
          %s412 = sshll.u32 %s405, 4
          %s413 = int_to_ptr.vmem [resolvable:$true] %s412
          %415 = dma.hbm_to_vmem [thread:$0]  %s410, 64, %s413, %s402
        $region52: #{tpu_custom_call.1} parent=39 // pred_fallthru
          _
      $region40: #{tpu_custom_call.1} parent=5 // pred_fallthru
        _
      %p416 = scmp.le.s32.totalorder 1, %s30
      %p417 = scmp.lt.s32.totalorder %s30, 3
      %p418 = pnand %p416, %p417
      %p419 = pneg %p418
      // Predicated region
      $region53: #{tpu_custom_call.1} parent=5 // pred_check
        _
      $region54: #{tpu_custom_call.1} parent=5 // pred_check_branch
        %421 = sbr.rel (%p418) target = $region56
      $region55: #{tpu_custom_call.1} parent=5 // pred_region
        %s422 = ssub.s32 %s30, 1
        %s423 = sand.u32 %s57, 1
        %s424 = scalar_lea.sflag [#allocation6], %s423
        %s425 = sand.u32 %s57, 1
        %s426 = smul.addr %s425, 4
        %s427 = scalar_lea.vmem [#allocation5], %s426
        // Predicated region
        $region57: #{tpu_custom_call.1} parent=55 // pred_check
          %p428 = pneg %p70
        $region58: #{tpu_custom_call.1} parent=55 // pred_check_branch
          %430 = sbr.rel (%p428) target = $region60
        $region59: #{tpu_custom_call.1} parent=55 // pred_region
          %431 = dma.done %s424, 64
        $region60: #{tpu_custom_call.1} parent=55 // pred_fallthru
          _
        %s432 = sand.u32 %s35, 1
        %s433 = scalar_lea.sflag [#allocation9], %s432
        %s434 = sand.u32 %s83, 1
        %s435 = smul.addr %s434, 4
        %s436 = scalar_lea.vmem [#allocation8], %s435
        // Predicated region
        $region61: #{tpu_custom_call.1} parent=55 // pred_check
          %p437 = pneg %p96
        $region62: #{tpu_custom_call.1} parent=55 // pred_check_branch
          %439 = sbr.rel (%p437) target = $region64
        $region63: #{tpu_custom_call.1} parent=55 // pred_region
          %440 = dma.done %s433, 64
        $region64: #{tpu_custom_call.1} parent=55 // pred_fallthru
          _
        %s441 = sand.u32 %s35, 1
        %s442 = scalar_lea.sflag [#allocation9], %s441
        %s443 = sand.u32 %s109, 1
        %s444 = smul.addr %s443, 4
        %s445 = scalar_lea.vmem [#allocation10], %s444
        // Predicated region
        $region65: #{tpu_custom_call.1} parent=55 // pred_check
          %p446 = pneg %p122
        $region66: #{tpu_custom_call.1} parent=55 // pred_check_branch
          %448 = sbr.rel (%p446) target = $region68
        $region67: #{tpu_custom_call.1} parent=55 // pred_region
          %449 = dma.done %s442, 64
        $region68: #{tpu_custom_call.1} parent=55 // pred_fallthru
          _
        // Predicated region
        $region69: #{tpu_custom_call.1} parent=55 // pred_check
          %p450 = pneg %p143
        $region70: #{tpu_custom_call.1} parent=55 // pred_check_branch
          %452 = sbr.rel (%p450) target = $region72
        $region71: #{tpu_custom_call.1} parent=55 // pred_region
          %453 = dma.done [#allocation12], 256
        $region72: #{tpu_custom_call.1} parent=55 // pred_fallthru
          _
        // Predicated region
        $region73: #{tpu_custom_call.1} parent=55 // pred_check
          %p454 = pneg %p164
        $region74: #{tpu_custom_call.1} parent=55 // pred_check_branch
          %456 = sbr.rel (%p454) target = $region76
        $region75: #{tpu_custom_call.1} parent=55 // pred_region
          %457 = dma.done [#allocation12], 256
        $region76: #{tpu_custom_call.1} parent=55 // pred_fallthru
          _
        %s458 = sand.u32 %s57, 1
        %s459 = scalar_lea.sflag [#allocation6], %s458
        %s460 = sand.u32 %s57, 1
        %s461 = smul.addr %s460, 4
        %s462 = scalar_lea.vmem [#allocation5], %s461
        %p463 = pneg %p70
        %p464 = pneg %p67
        %s465 = sand.u32 %s35, 1
        %s466 = scalar_lea.sflag [#allocation9], %s465
        %s467 = sand.u32 %s83, 1
        %s468 = smul.addr %s467, 4
        %s469 = scalar_lea.vmem [#allocation8], %s468
        %p470 = pneg %p96
        %p471 = pneg %p93
        %s472 = sand.u32 %s35, 1
        %s473 = scalar_lea.sflag [#allocation9], %s472
        %s474 = sand.u32 %s109, 1
        %s475 = smul.addr %s474, 4
        %s476 = scalar_lea.vmem [#allocation10], %s475
        %p477 = pneg %p122
        %p478 = pneg %p119
        %p479 = pneg %p143
        %p480 = pneg %p140
        %p481 = pneg %p164
        %p482 = pneg %p161
        %p483 = pneg %p185
        %p484 = pneg %p182
        %p485 = pneg %p206
        %p486 = pneg %p203
        %p487 = pneg %p227
        %p488 = pneg %p224
        %p489 = pneg %p248
        %p490 = pneg %p245
        %p491 = pneg %p276
        %p492 = pneg %p273
        %s493 = sand.u32 %s263, 1
        %s494 = scalar_lea.sflag [#allocation7], %s493
        %s495 = sand.u32 %s263, 1
        %s496 = smul.addr %s495, 8
        %s497 = scalar_lea.vmem [#allocation14], %s496
        %p498 = pneg %p304
        %p499 = pneg %p301
        %s500 = sand.u32 %s291, 1
        %s501 = scalar_lea.sflag [#allocation16], %s500
        %s502 = sand.u32 %s291, 1
        %s503 = smul.addr %s502, 16
        %s504 = scalar_lea.vmem [#allocation15], %s503
        %p506 = scmp.eq.s32.totalorder %s40, 0
        // Predicated region
        $region77: #{tpu_custom_call.1} parent=55 // pred_check
          %p507 = pneg %p506
        $region78: #{tpu_custom_call.1} parent=55 // pred_check_branch
          %509 = sbr.rel (%p507) target = $region80
        $region79: #{tpu_custom_call.1} parent=55 // pred_region
          %v510 = vld [vmem:[%s436] sm:$0xf]
          %v511 = vld [vmem:[#allocation13] sm:$0xf]
          %v512 = vld [vmem:[#allocation13 + $0x4] sm:$0xf]
          %v513 = vld [vmem:[#allocation13 + $0x8] sm:$0xf]
          %v514 = vld [vmem:[#allocation13 + $0xc] sm:$0xf]
          %v515 = vld [vmem:[%s7] sm:$0x1]
          %v517 = vlaneseq
          %v518 = vshrl.u32 %v517, 7
          %v519 = vsub.s32 0, %v518
          %v520 = vrot.slane %v515, %v519
          %v526 = vunpack.c.l.b16 %v511
          %v527 = vunpack.c.l.b16 %v512
          %v528 = vunpack.c.l.b16 %v513
          %v529 = vunpack.c.l.b16 %v514
          %v530 = vpack.c.b16 %v527, %v526
          %v531 = vpack.c.b16 %v529, %v528
          %vm534 = vcmask 261120
          %v536 = vsel %vm534, %v510, 0
          %538 = vmatprep.subr.bf16.mxu0 0
          %539 = vmatpush1.bf16.msra.mxu0 %v530
          %540 = vmatprep.subr.bf16.mxu0 0
          %541 = vmatpush1.bf16.msra.mxu0 %v531
          %542 = vmatprep.subr.bf16.mxu0 0
          %543 = vmatpush1.bf16.msra.mxu0 0
          %544 = vmatprep.subr.bf16.mxu0 0
          %545 = vmatpush1.bf16.msra.mxu0 0
          %546 = vmatprep.subr.bf16.mxu0 0
          %547 = vmatpush1.bf16.msra.mxu0 0
          %548 = vmatprep.subr.bf16.mxu0 0
          %549 = vmatpush1.bf16.msra.mxu0 0
          %550 = vmatprep.subr.bf16.mxu0 0
          %551 = vmatpush1.bf16.msra.mxu0 0
          %552 = vmatprep.subr.bf16.mxu0 0
          %553 = vmatpush1.bf16.msra.mxu0 0
          %554 = vmatprep.subr.bf16.mxu0 0
          %555 = vmatpush1.bf16.msra.mxu0 0
          %556 = vmatprep.subr.bf16.mxu0 0
          %557 = vmatpush1.bf16.msra.mxu0 0
          %558 = vmatprep.subr.bf16.mxu0 0
          %559 = vmatpush1.bf16.msra.mxu0 0
          %560 = vmatprep.subr.bf16.mxu0 0
          %561 = vmatpush1.bf16.msra.mxu0 0
          %562 = vmatprep.subr.bf16.mxu0 0
          %563 = vmatpush1.bf16.msra.mxu0 0
          %564 = vmatprep.subr.bf16.mxu0 0
          %565 = vmatpush1.bf16.msra.mxu0 0
          %566 = vmatprep.subr.bf16.mxu0 0
          %567 = vmatpush1.bf16.msra.mxu0 0
          %568 = vmatprep.subr.bf16.mxu0 0
          %569 = vmatpush1.bf16.msra.mxu0 0
          %570 = vmatprep.mubr.bf16.mxu0 0
          %571 = vmatmul.mubr.bf16.gmra.mrb[0].mxu0 %v536
          %v572 = vpop.f32.mrb[0].mxu0
          %v573 = vadd.f32 %v520, %v572
          %v574 = vpop.f32.mrb[0].mxu0
          %v575 = vpop.f32.mrb[0].mxu0
          %v576 = vpop.f32.mrb[0].mxu0
          %577 = vdwg.mxu0
          %v578 = vld [vmem:[%s445] sm:$0xf]
          %v579 = vld [vmem:[%s5] sm:$0xf]
          %v580 = vld [vmem:[%s5 + $0x4] sm:$0xf]
          %v581 = vld [vmem:[%s5 + $0x8] sm:$0xf]
          %v582 = vld [vmem:[%s5 + $0xc] sm:$0xf]
          %v583 = vld [vmem:[%s8] sm:$0x1]
          %v585 = vlaneseq
          %v586 = vshrl.u32 %v585, 7
          %v587 = vsub.s32 0, %v586
          %v588 = vrot.slane %v583, %v587
          %v594 = vunpack.c.l.b16 %v579
          %v595 = vunpack.c.l.b16 %v580
          %v596 = vunpack.c.l.b16 %v581
          %v597 = vunpack.c.l.b16 %v582
          %v598 = vpack.c.b16 %v595, %v594
          %v599 = vpack.c.b16 %v597, %v596
          %v603 = vsel %vm534, %v578, 0
          %605 = vmatprep.subr.bf16.mxu0 0
          %606 = vmatpush1.bf16.msra.mxu0 %v598
          %607 = vmatprep.subr.bf16.mxu0 0
          %608 = vmatpush1.bf16.msra.mxu0 %v599
          %609 = vmatprep.subr.bf16.mxu0 0
          %610 = vmatpush1.bf16.msra.mxu0 0
          %611 = vmatprep.subr.bf16.mxu0 0
          %612 = vmatpush1.bf16.msra.mxu0 0
          %613 = vmatprep.subr.bf16.mxu0 0
          %614 = vmatpush1.bf16.msra.mxu0 0
          %615 = vmatprep.subr.bf16.mxu0 0
          %616 = vmatpush1.bf16.msra.mxu0 0
          %617 = vmatprep.subr.bf16.mxu0 0
          %618 = vmatpush1.bf16.msra.mxu0 0
          %619 = vmatprep.subr.bf16.mxu0 0
          %620 = vmatpush1.bf16.msra.mxu0 0
          %621 = vmatprep.subr.bf16.mxu0 0
          %622 = vmatpush1.bf16.msra.mxu0 0
          %623 = vmatprep.subr.bf16.mxu0 0
          %624 = vmatpush1.bf16.msra.mxu0 0
          %625 = vmatprep.subr.bf16.mxu0 0
          %626 = vmatpush1.bf16.msra.mxu0 0
          %627 = vmatprep.subr.bf16.mxu0 0
          %628 = vmatpush1.bf16.msra.mxu0 0
          %629 = vmatprep.subr.bf16.mxu0 0
          %630 = vmatpush1.bf16.msra.mxu0 0
          %631 = vmatprep.subr.bf16.mxu0 0
          %632 = vmatpush1.bf16.msra.mxu0 0
          %633 = vmatprep.subr.bf16.mxu0 0
          %634 = vmatpush1.bf16.msra.mxu0 0
          %635 = vmatprep.subr.bf16.mxu0 0
          %636 = vmatpush1.bf16.msra.mxu0 0
          %637 = vmatprep.mubr.bf16.mxu0 0
          %638 = vmatmul.mubr.bf16.gmra.mrb[0].mxu0 %v603
          %v639 = vpop.f32.mrb[0].mxu0
          %v640 = vadd.f32 %v588, %v639
          %v641 = vpop.f32.mrb[0].mxu0
          %v642 = vpop.f32.mrb[0].mxu0
          %v643 = vpop.f32.mrb[0].mxu0
          %644 = vdwg.mxu0
          %v645 = vpack.c.bf16 %v573, %v573
          %vm646 = vcmask 257024
          %647 = vst.msk [vmem:[#allocation2] sm:$0xf] %vm646, %v645
          %v648 = vpack.c.bf16 %v640, %v640
          %649 = vst.msk [vmem:[#allocation3] sm:$0xf] %vm646, %v648
        $region80: #{tpu_custom_call.1} parent=55 // pred_fallthru
          _
        %v650 = vld [vmem:[%s427] sm:$0xf]
        %v651 = vld [vmem:[#allocation11] sm:$0xf]
        %v652 = vld [vmem:[#allocation11 + $0x4] sm:$0xf]
        %v653 = vld [vmem:[#allocation11 + $0x8] sm:$0xf]
        %v654 = vld [vmem:[#allocation11 + $0xc] sm:$0xf]
        %v655 = vld [vmem:[%s6] sm:$0x1]
        %v657 = vlaneseq
        %v658 = vshrl.u32 %v657, 7
        %v659 = vsub.s32 0, %v658
        %v660 = vrot.slane %v655, %v659
        %v666 = vunpack.c.l.b16 %v651
        %v667 = vunpack.c.l.b16 %v652
        %v668 = vunpack.c.l.b16 %v653
        %v669 = vunpack.c.l.b16 %v654
        %v670 = vpack.c.b16 %v667, %v666
        %v671 = vpack.c.b16 %v669, %v668
        %vm674 = vcmask 261120
        %v676 = vsel %vm674, %v650, 0
        %678 = vmatprep.subr.bf16.mxu0 0
        %679 = vmatpush1.bf16.msra.mxu0 %v670
        %680 = vmatprep.subr.bf16.mxu0 0
        %681 = vmatpush1.bf16.msra.mxu0 %v671
        %682 = vmatprep.subr.bf16.mxu0 0
        %683 = vmatpush1.bf16.msra.mxu0 0
        %684 = vmatprep.subr.bf16.mxu0 0
        %685 = vmatpush1.bf16.msra.mxu0 0
        %686 = vmatprep.subr.bf16.mxu0 0
        %687 = vmatpush1.bf16.msra.mxu0 0
        %688 = vmatprep.subr.bf16.mxu0 0
        %689 = vmatpush1.bf16.msra.mxu0 0
        %690 = vmatprep.subr.bf16.mxu0 0
        %691 = vmatpush1.bf16.msra.mxu0 0
        %692 = vmatprep.subr.bf16.mxu0 0
        %693 = vmatpush1.bf16.msra.mxu0 0
        %694 = vmatprep.subr.bf16.mxu0 0
        %695 = vmatpush1.bf16.msra.mxu0 0
        %696 = vmatprep.subr.bf16.mxu0 0
        %697 = vmatpush1.bf16.msra.mxu0 0
        %698 = vmatprep.subr.bf16.mxu0 0
        %699 = vmatpush1.bf16.msra.mxu0 0
        %700 = vmatprep.subr.bf16.mxu0 0
        %701 = vmatpush1.bf16.msra.mxu0 0
        %702 = vmatprep.subr.bf16.mxu0 0
        %703 = vmatpush1.bf16.msra.mxu0 0
        %704 = vmatprep.subr.bf16.mxu0 0
        %705 = vmatpush1.bf16.msra.mxu0 0
        %706 = vmatprep.subr.bf16.mxu0 0
        %707 = vmatpush1.bf16.msra.mxu0 0
        %708 = vmatprep.subr.bf16.mxu0 0
        %709 = vmatpush1.bf16.msra.mxu0 0
        %710 = vmatprep.mubr.bf16.mxu0 0
        %711 = vmatmul.mubr.bf16.gmra.mrb[0].mxu0 %v676
        %v712 = vpop.f32.mrb[0].mxu0
        %v713 = vadd.f32 %v660, %v712
        %v714 = vpop.f32.mrb[0].mxu0
        %v715 = vpop.f32.mrb[0].mxu0
        %v716 = vpop.f32.mrb[0].mxu0
        %717 = vdwg.mxu0
        %v718 = vmul.f32 %v713, 0.35355338
        %v719 = vpack.c.bf16 %v718, %v718
        %v720 = vld [vmem:[#allocation2] sm:$0xf]
        %v721 = vld [vmem:[#allocation3] sm:$0xf]
        %vm722 = vcmask 64512
        %v724 = vsel %vm722, %v719, 0
        %v727 = vsel %vm722, %v720, 0
        %729 = vmatprep.subr.bf16.mxu0 0
        %730 = vmatpush1.bf16.xpose.msra.mxu0 %v727
        %731 = vmatprep.subr.bf16.mxu0 0
        %732 = vmatpush1.bf16.xpose.msra.mxu0 0
        %733 = vmatprep.subr.bf16.mxu0 0
        %734 = vmatpush1.bf16.xpose.msra.mxu0 0
        %735 = vmatprep.subr.bf16.mxu0 0
        %736 = vmatpush1.bf16.xpose.msra.mxu0 0
        %737 = vmatprep.subr.bf16.mxu0 0
        %738 = vmatpush1.bf16.xpose.msra.mxu0 0
        %739 = vmatprep.subr.bf16.mxu0 0
        %740 = vmatpush1.bf16.xpose.msra.mxu0 0
        %741 = vmatprep.subr.bf16.mxu0 0
        %742 = vmatpush1.bf16.xpose.msra.mxu0 0
        %743 = vmatprep.subr.bf16.mxu0 0
        %744 = vmatpush1.bf16.xpose.msra.mxu0 0
        %745 = vmatprep.subr.bf16.mxu0 0
        %746 = vmatpush1.bf16.xpose.msra.mxu0 0
        %747 = vmatprep.subr.bf16.mxu0 0
        %748 = vmatpush1.bf16.xpose.msra.mxu0 0
        %749 = vmatprep.subr.bf16.mxu0 0
        %750 = vmatpush1.bf16.xpose.msra.mxu0 0
        %751 = vmatprep.subr.bf16.mxu0 0
        %752 = vmatpush1.bf16.xpose.msra.mxu0 0
        %753 = vmatprep.subr.bf16.mxu0 0
        %754 = vmatpush1.bf16.xpose.msra.mxu0 0
        %755 = vmatprep.subr.bf16.mxu0 0
        %756 = vmatpush1.bf16.xpose.msra.mxu0 0
        %757 = vmatprep.subr.bf16.mxu0 0
        %758 = vmatpush1.bf16.xpose.msra.mxu0 0
        %759 = vmatprep.subr.bf16.mxu0 0
        %760 = vmatpush1.bf16.xpose.msra.mxu0 0
        %761 = vmatprep.mubr.bf16.mxu0 0
        %762 = vmatmul.mubr.bf16.gmra.mrb[0].mxu0 %v724
        %v763 = vpop.f32.mrb[0].mxu0
        %v764 = vadd.f32 0.0, %v763
        %v765 = vpop.f32.mrb[0].mxu0
        %v766 = vpop.f32.mrb[0].mxu0
        %v767 = vpop.f32.mrb[0].mxu0
        %768 = vdwg.mxu0
        %v769 = vsel %vm722, %v764, -inf
        %770 = vmax.xlane.f32.xlu0 %v769
        %v771 = vpop.xlane.xlu0 %770
        %v772 = vsub.f32 %v764, %v771
        %v773 = vmul.f32 %v772, 1.442695
        %v774 = vpow.pop %v773
        %v775 = vsel %vm722, %v774, 0.0
        %776 = vadd.xlane.f32.xlu0 %v775
        %v777 = vpop.xlane.xlu0 %776
        %v778 = vrcp.pop %v777
        %v779 = vmul.f32 %v774, %v778
        %v780 = vpack.c.bf16 %v779, %v779
        %vm781 = vcmask 60416
        %782 = vst.msk [vmem:[%s504] sm:$0xf] %vm781, %v780
        %v784 = vsel %vm722, %v780, 0
        %vm786 = vcmask 1043456
        %v788 = vsel %vm786, %v721, 0
        %790 = vmatprep.subr.bf16.mxu0 0
        %791 = vmatpush1.bf16.msra.mxu0 %v788
        %792 = vmatprep.subr.bf16.mxu0 0
        %793 = vmatpush1.bf16.msra.mxu0 0
        %794 = vmatprep.subr.bf16.mxu0 0
        %795 = vmatpush1.bf16.msra.mxu0 0
        %796 = vmatprep.subr.bf16.mxu0 0
        %797 = vmatpush1.bf16.msra.mxu0 0
        %798 = vmatprep.subr.bf16.mxu0 0
        %799 = vmatpush1.bf16.msra.mxu0 0
        %800 = vmatprep.subr.bf16.mxu0 0
        %801 = vmatpush1.bf16.msra.mxu0 0
        %802 = vmatprep.subr.bf16.mxu0 0
        %803 = vmatpush1.bf16.msra.mxu0 0
        %804 = vmatprep.subr.bf16.mxu0 0
        %805 = vmatpush1.bf16.msra.mxu0 0
        %806 = vmatprep.subr.bf16.mxu0 0
        %807 = vmatpush1.bf16.msra.mxu0 0
        %808 = vmatprep.subr.bf16.mxu0 0
        %809 = vmatpush1.bf16.msra.mxu0 0
        %810 = vmatprep.subr.bf16.mxu0 0
        %811 = vmatpush1.bf16.msra.mxu0 0
        %812 = vmatprep.subr.bf16.mxu0 0
        %813 = vmatpush1.bf16.msra.mxu0 0
        %814 = vmatprep.subr.bf16.mxu0 0
        %815 = vmatpush1.bf16.msra.mxu0 0
        %816 = vmatprep.subr.bf16.mxu0 0
        %817 = vmatpush1.bf16.msra.mxu0 0
        %818 = vmatprep.subr.bf16.mxu0 0
        %819 = vmatpush1.bf16.msra.mxu0 0
        %820 = vmatprep.subr.bf16.mxu0 0
        %821 = vmatpush1.bf16.msra.mxu0 0
        %822 = vmatprep.mubr.bf16.mxu0 0
        %823 = vmatmul.mubr.bf16.gmra.mrb[0].mxu0 %v784
        %v824 = vpop.f32.mrb[0].mxu0
        %v825 = vadd.f32 0.0, %v824
        %v826 = vpop.f32.mrb[0].mxu0
        %v827 = vpop.f32.mrb[0].mxu0
        %v828 = vpop.f32.mrb[0].mxu0
        %829 = vdwg.mxu0
        %830 = vst.msk [vmem:[#allocation4] sm:$0xff] %vm722, %v825
        %832 = vrot.lane.b32.xlu0 %v719, 120
        %v833 = vpop.permute.xlu0 %832
        %v835 = vunpack.c.l.b16 %v720
        %v836 = vpack.c.b16 %v835, %v835
        %837 = vrot.lane.b32.xlu0 %v836, 120
        %v838 = vpop.permute.xlu0 %837
        %v840 = vsel %vm722, %v833, 0
        %v843 = vsel %vm722, %v838, 0
        %845 = vmatprep.subr.bf16.mxu0 0
        %846 = vmatpush1.bf16.xpose.msra.mxu0 %v843
        %847 = vmatprep.subr.bf16.mxu0 0
        %848 = vmatpush1.bf16.xpose.msra.mxu0 0
        %849 = vmatprep.subr.bf16.mxu0 0
        %850 = vmatpush1.bf16.xpose.msra.mxu0 0
        %851 = vmatprep.subr.bf16.mxu0 0
        %852 = vmatpush1.bf16.xpose.msra.mxu0 0
        %853 = vmatprep.subr.bf16.mxu0 0
        %854 = vmatpush1.bf16.xpose.msra.mxu0 0
        %855 = vmatprep.subr.bf16.mxu0 0
        %856 = vmatpush1.bf16.xpose.msra.mxu0 0
        %857 = vmatprep.subr.bf16.mxu0 0
        %858 = vmatpush1.bf16.xpose.msra.mxu0 0
        %859 = vmatprep.subr.bf16.mxu0 0
        %860 = vmatpush1.bf16.xpose.msra.mxu0 0
        %861 = vmatprep.subr.bf16.mxu0 0
        %862 = vmatpush1.bf16.xpose.msra.mxu0 0
        %863 = vmatprep.subr.bf16.mxu0 0
        %864 = vmatpush1.bf16.xpose.msra.mxu0 0
        %865 = vmatprep.subr.bf16.mxu0 0
        %866 = vmatpush1.bf16.xpose.msra.mxu0 0
        %867 = vmatprep.subr.bf16.mxu0 0
        %868 = vmatpush1.bf16.xpose.msra.mxu0 0
        %869 = vmatprep.subr.bf16.mxu0 0
        %870 = vmatpush1.bf16.xpose.msra.mxu0 0
        %871 = vmatprep.subr.bf16.mxu0 0
        %872 = vmatpush1.bf16.xpose.msra.mxu0 0
        %873 = vmatprep.subr.bf16.mxu0 0
        %874 = vmatpush1.bf16.xpose.msra.mxu0 0
        %875 = vmatprep.subr.bf16.mxu0 0
        %876 = vmatpush1.bf16.xpose.msra.mxu0 0
        %877 = vmatprep.mubr.bf16.mxu0 0
        %878 = vmatmul.mubr.bf16.gmra.mrb[0].mxu0 %v840
        %v879 = vpop.f32.mrb[0].mxu0
        %v880 = vadd.f32 0.0, %v879
        %v881 = vpop.f32.mrb[0].mxu0
        %v882 = vpop.f32.mrb[0].mxu0
        %v883 = vpop.f32.mrb[0].mxu0
        %884 = vdwg.mxu0
        %v885 = vsel %vm722, %v880, -inf
        %886 = vmax.xlane.f32.xlu0 %v885
        %v887 = vpop.xlane.xlu0 %886
        %v888 = vsub.f32 %v880, %v887
        %v889 = vmul.f32 %v888, 1.442695
        %v890 = vpow.pop %v889
        %v891 = vsel %vm722, %v890, 0.0
        %892 = vadd.xlane.f32.xlu0 %v891
        %v893 = vpop.xlane.xlu0 %892
        %v894 = vrcp.pop %v893
        %v895 = vmul.f32 %v890, %v894
        %v896 = vpack.c.bf16 %v895, %v895
        %s897 = scalar_lea.vmem %s504, 4 [#allocation15]
        %898 = vst.msk [vmem:[%s897] sm:$0xf] %vm781, %v896
        %v900 = vunpack.c.l.b16 %v721
        %v901 = vpack.c.b16 %v900, %v900
        %902 = vrot.lane.b32.xlu0 %v901, 120
        %v903 = vpop.permute.xlu0 %902
        %v905 = vsel %vm722, %v896, 0
        %v908 = vsel %vm786, %v903, 0
        %910 = vmatprep.subr.bf16.mxu0 0
        %911 = vmatpush1.bf16.msra.mxu0 %v908
        %912 = vmatprep.subr.bf16.mxu0 0
        %913 = vmatpush1.bf16.msra.mxu0 0
        %914 = vmatprep.subr.bf16.mxu0 0
        %915 = vmatpush1.bf16.msra.mxu0 0
        %916 = vmatprep.subr.bf16.mxu0 0
        %917 = vmatpush1.bf16.msra.mxu0 0
        %918 = vmatprep.subr.bf16.mxu0 0
        %919 = vmatpush1.bf16.msra.mxu0 0
        %920 = vmatprep.subr.bf16.mxu0 0
        %921 = vmatpush1.bf16.msra.mxu0 0
        %922 = vmatprep.subr.bf16.mxu0 0
        %923 = vmatpush1.bf16.msra.mxu0 0
        %924 = vmatprep.subr.bf16.mxu0 0
        %925 = vmatpush1.bf16.msra.mxu0 0
        %926 = vmatprep.subr.bf16.mxu0 0
        %927 = vmatpush1.bf16.msra.mxu0 0
        %928 = vmatprep.subr.bf16.mxu0 0
        %929 = vmatpush1.bf16.msra.mxu0 0
        %930 = vmatprep.subr.bf16.mxu0 0
        %931 = vmatpush1.bf16.msra.mxu0 0
        %932 = vmatprep.subr.bf16.mxu0 0
        %933 = vmatpush1.bf16.msra.mxu0 0
        %934 = vmatprep.subr.bf16.mxu0 0
        %935 = vmatpush1.bf16.msra.mxu0 0
        %936 = vmatprep.subr.bf16.mxu0 0
        %937 = vmatpush1.bf16.msra.mxu0 0
        %938 = vmatprep.subr.bf16.mxu0 0
        %939 = vmatpush1.bf16.msra.mxu0 0
        %940 = vmatprep.subr.bf16.mxu0 0
        %941 = vmatpush1.bf16.msra.mxu0 0
        %942 = vmatprep.mubr.bf16.mxu0 0
        %943 = vmatmul.mubr.bf16.gmra.mrb[0].mxu0 %v905
        %v944 = vpop.f32.mrb[0].mxu0
        %v945 = vadd.f32 0.0, %v944
        %v946 = vpop.f32.mrb[0].mxu0
        %v947 = vpop.f32.mrb[0].mxu0
        %v948 = vpop.f32.mrb[0].mxu0
        %949 = vdwg.mxu0
        %951 = vrot.lane.b32.xlu0 %v945, 8
        %v952 = vpop.permute.xlu0 %951
        %vm954 = vcmask 130112
        %955 = vst.msk [vmem:[#allocation4] sm:$0xff] %vm954, %v952
        %956 = vrot.lane.b32.xlu0 %v719, 112
        %v957 = vpop.permute.xlu0 %956
        %958 = vrot.lane.b32.xlu0 %v836, 112
        %v959 = vpop.permute.xlu0 %958
        %v961 = vsel %vm722, %v957, 0
        %v964 = vsel %vm722, %v959, 0
        %966 = vmatprep.subr.bf16.mxu0 0
        %967 = vmatpush1.bf16.xpose.msra.mxu0 %v964
        %968 = vmatprep.subr.bf16.mxu0 0
        %969 = vmatpush1.bf16.xpose.msra.mxu0 0
        %970 = vmatprep.subr.bf16.mxu0 0
        %971 = vmatpush1.bf16.xpose.msra.mxu0 0
        %972 = vmatprep.subr.bf16.mxu0 0
        %973 = vmatpush1.bf16.xpose.msra.mxu0 0
        %974 = vmatprep.subr.bf16.mxu0 0
        %975 = vmatpush1.bf16.xpose.msra.mxu0 0
        %976 = vmatprep.subr.bf16.mxu0 0
        %977 = vmatpush1.bf16.xpose.msra.mxu0 0
        %978 = vmatprep.subr.bf16.mxu0 0
        %979 = vmatpush1.bf16.xpose.msra.mxu0 0
        %980 = vmatprep.subr.bf16.mxu0 0
        %981 = vmatpush1.bf16.xpose.msra.mxu0 0
        %982 = vmatprep.subr.bf16.mxu0 0
        %983 = vmatpush1.bf16.xpose.msra.mxu0 0
        %984 = vmatprep.subr.bf16.mxu0 0
        %985 = vmatpush1.bf16.xpose.msra.mxu0 0
        %986 = vmatprep.subr.bf16.mxu0 0
        %987 = vmatpush1.bf16.xpose.msra.mxu0 0
        %988 = vmatprep.subr.bf16.mxu0 0
        %989 = vmatpush1.bf16.xpose.msra.mxu0 0
        %990 = vmatprep.subr.bf16.mxu0 0
        %991 = vmatpush1.bf16.xpose.msra.mxu0 0
        %992 = vmatprep.subr.bf16.mxu0 0
        %993 = vmatpush1.bf16.xpose.msra.mxu0 0
        %994 = vmatprep.subr.bf16.mxu0 0
        %995 = vmatpush1.bf16.xpose.msra.mxu0 0
        %996 = vmatprep.subr.bf16.mxu0 0
        %997 = vmatpush1.bf16.xpose.msra.mxu0 0
        %998 = vmatprep.mubr.bf16.mxu0 0
        %999 = vmatmul.mubr.bf16.gmra.mrb[0].mxu0 %v961
        %v1000 = vpop.f32.mrb[0].mxu0
        %v1001 = vadd.f32 0.0, %v1000
        %v1002 = vpop.f32.mrb[0].mxu0
        %v1003 = vpop.f32.mrb[0].mxu0
        %v1004 = vpop.f32.mrb[0].mxu0
        %1005 = vdwg.mxu0
        %v1006 = vsel %vm722, %v1001, -inf
        %1007 = vmax.xlane.f32.xlu0 %v1006
        %v1008 = vpop.xlane.xlu0 %1007
        %v1009 = vsub.f32 %v1001, %v1008
        %v1010 = vmul.f32 %v1009, 1.442695
        %v1011 = vpow.pop %v1010
        %v1012 = vsel %vm722, %v1011, 0.0
        %1013 = vadd.xlane.f32.xlu0 %v1012
        %v1014 = vpop.xlane.xlu0 %1013
        %v1015 = vrcp.pop %v1014
        %v1016 = vmul.f32 %v1011, %v1015
        %v1017 = vpack.c.bf16 %v1016, %v1016
        %s1018 = scalar_lea.vmem %s504, 8 [#allocation15]
        %1019 = vst.msk [vmem:[%s1018] sm:$0xf] %vm781, %v1017
        %1020 = vrot.lane.b32.xlu0 %v901, 112
        %v1021 = vpop.permute.xlu0 %1020
        %v1023 = vsel %vm722, %v1017, 0
        %v1026 = vsel %vm786, %v1021, 0
        %1028 = vmatprep.subr.bf16.mxu0 0
        %1029 = vmatpush1.bf16.msra.mxu0 %v1026
        %1030 = vmatprep.subr.bf16.mxu0 0
        %1031 = vmatpush1.bf16.msra.mxu0 0
        %1032 = vmatprep.subr.bf16.mxu0 0
        %1033 = vmatpush1.bf16.msra.mxu0 0
        %1034 = vmatprep.subr.bf16.mxu0 0
        %1035 = vmatpush1.bf16.msra.mxu0 0
        %1036 = vmatprep.subr.bf16.mxu0 0
        %1037 = vmatpush1.bf16.msra.mxu0 0
        %1038 = vmatprep.subr.bf16.mxu0 0
        %1039 = vmatpush1.bf16.msra.mxu0 0
        %1040 = vmatprep.subr.bf16.mxu0 0
        %1041 = vmatpush1.bf16.msra.mxu0 0
        %1042 = vmatprep.subr.bf16.mxu0 0
        %1043 = vmatpush1.bf16.msra.mxu0 0
        %1044 = vmatprep.subr.bf16.mxu0 0
        %1045 = vmatpush1.bf16.msra.mxu0 0
        %1046 = vmatprep.subr.bf16.mxu0 0
        %1047 = vmatpush1.bf16.msra.mxu0 0
        %1048 = vmatprep.subr.bf16.mxu0 0
        %1049 = vmatpush1.bf16.msra.mxu0 0
        %1050 = vmatprep.subr.bf16.mxu0 0
        %1051 = vmatpush1.bf16.msra.mxu0 0
        %1052 = vmatprep.subr.bf16.mxu0 0
        %1053 = vmatpush1.bf16.msra.mxu0 0
        %1054 = vmatprep.subr.bf16.mxu0 0
        %1055 = vmatpush1.bf16.msra.mxu0 0
        %1056 = vmatprep.subr.bf16.mxu0 0
        %1057 = vmatpush1.bf16.msra.mxu0 0
        %1058 = vmatprep.subr.bf16.mxu0 0
        %1059 = vmatpush1.bf16.msra.mxu0 0
        %1060 = vmatprep.mubr.bf16.mxu0 0
        %1061 = vmatmul.mubr.bf16.gmra.mrb[0].mxu0 %v1023
        %v1062 = vpop.f32.mrb[0].mxu0
        %v1063 = vadd.f32 0.0, %v1062
        %v1064 = vpop.f32.mrb[0].mxu0
        %v1065 = vpop.f32.mrb[0].mxu0
        %v1066 = vpop.f32.mrb[0].mxu0
        %1067 = vdwg.mxu0
        %1069 = vrot.lane.b32.xlu0 %v1063, 16
        %v1070 = vpop.permute.xlu0 %1069
        %vm1072 = vcmask 195712
        %1073 = vst.msk [vmem:[#allocation4] sm:$0xff] %vm1072, %v1070
        %1074 = vrot.lane.b32.xlu0 %v719, 104
        %v1075 = vpop.permute.xlu0 %1074
        %1076 = vrot.lane.b32.xlu0 %v836, 104
        %v1077 = vpop.permute.xlu0 %1076
        %v1079 = vsel %vm722, %v1075, 0
        %v1082 = vsel %vm722, %v1077, 0
        %1084 = vmatprep.subr.bf16.mxu0 0
        %1085 = vmatpush1.bf16.xpose.msra.mxu0 %v1082
        %1086 = vmatprep.subr.bf16.mxu0 0
        %1087 = vmatpush1.bf16.xpose.msra.mxu0 0
        %1088 = vmatprep.subr.bf16.mxu0 0
        %1089 = vmatpush1.bf16.xpose.msra.mxu0 0
        %1090 = vmatprep.subr.bf16.mxu0 0
        %1091 = vmatpush1.bf16.xpose.msra.mxu0 0
        %1092 = vmatprep.subr.bf16.mxu0 0
        %1093 = vmatpush1.bf16.xpose.msra.mxu0 0
        %1094 = vmatprep.subr.bf16.mxu0 0
        %1095 = vmatpush1.bf16.xpose.msra.mxu0 0
        %1096 = vmatprep.subr.bf16.mxu0 0
        %1097 = vmatpush1.bf16.xpose.msra.mxu0 0
        %1098 = vmatprep.subr.bf16.mxu0 0
        %1099 = vmatpush1.bf16.xpose.msra.mxu0 0
        %1100 = vmatprep.subr.bf16.mxu0 0
        %1101 = vmatpush1.bf16.xpose.msra.mxu0 0
        %1102 = vmatprep.subr.bf16.mxu0 0
        %1103 = vmatpush1.bf16.xpose.msra.mxu0 0
        %1104 = vmatprep.subr.bf16.mxu0 0
        %1105 = vmatpush1.bf16.xpose.msra.mxu0 0
        %1106 = vmatprep.subr.bf16.mxu0 0
        %1107 = vmatpush1.bf16.xpose.msra.mxu0 0
        %1108 = vmatprep.subr.bf16.mxu0 0
        %1109 = vmatpush1.bf16.xpose.msra.mxu0 0
        %1110 = vmatprep.subr.bf16.mxu0 0
        %1111 = vmatpush1.bf16.xpose.msra.mxu0 0
        %1112 = vmatprep.subr.bf16.mxu0 0
        %1113 = vmatpush1.bf16.xpose.msra.mxu0 0
        %1114 = vmatprep.subr.bf16.mxu0 0
        %1115 = vmatpush1.bf16.xpose.msra.mxu0 0
        %1116 = vmatprep.mubr.bf16.mxu0 0
        %1117 = vmatmul.mubr.bf16.gmra.mrb[0].mxu0 %v1079
        %v1118 = vpop.f32.mrb[0].mxu0
        %v1119 = vadd.f32 0.0, %v1118
        %v1120 = vpop.f32.mrb[0].mxu0
        %v1121 = vpop.f32.mrb[0].mxu0
        %v1122 = vpop.f32.mrb[0].mxu0
        %1123 = vdwg.mxu0
        %v1124 = vsel %vm722, %v1119, -inf
        %1125 = vmax.xlane.f32.xlu0 %v1124
        %v1126 = vpop.xlane.xlu0 %1125
        %v1127 = vsub.f32 %v1119, %v1126
        %v1128 = vmul.f32 %v1127, 1.442695
        %v1129 = vpow.pop %v1128
        %v1130 = vsel %vm722, %v1129, 0.0
        %1131 = vadd.xlane.f32.xlu0 %v1130
        %v1132 = vpop.xlane.xlu0 %1131
        %v1133 = vrcp.pop %v1132
        %v1134 = vmul.f32 %v1129, %v1133
        %v1135 = vpack.c.bf16 %v1134, %v1134
        %s1136 = scalar_lea.vmem %s504, 12 [#allocation15]
        %1137 = vst.msk [vmem:[%s1136] sm:$0xf] %vm781, %v1135
        %1138 = vrot.lane.b32.xlu0 %v901, 104
        %v1139 = vpop.permute.xlu0 %1138
        %v1141 = vsel %vm722, %v1135, 0
        %v1144 = vsel %vm786, %v1139, 0
        %1146 = vmatprep.subr.bf16.mxu0 0
        %1147 = vmatpush1.bf16.msra.mxu0 %v1144
        %1148 = vmatprep.subr.bf16.mxu0 0
        %1149 = vmatpush1.bf16.msra.mxu0 0
        %1150 = vmatprep.subr.bf16.mxu0 0
        %1151 = vmatpush1.bf16.msra.mxu0 0
        %1152 = vmatprep.subr.bf16.mxu0 0
        %1153 = vmatpush1.bf16.msra.mxu0 0
        %1154 = vmatprep.subr.bf16.mxu0 0
        %1155 = vmatpush1.bf16.msra.mxu0 0
        %1156 = vmatprep.subr.bf16.mxu0 0
        %1157 = vmatpush1.bf16.msra.mxu0 0
        %1158 = vmatprep.subr.bf16.mxu0 0
        %1159 = vmatpush1.bf16.msra.mxu0 0
        %1160 = vmatprep.subr.bf16.mxu0 0
        %1161 = vmatpush1.bf16.msra.mxu0 0
        %1162 = vmatprep.subr.bf16.mxu0 0
        %1163 = vmatpush1.bf16.msra.mxu0 0
        %1164 = vmatprep.subr.bf16.mxu0 0
        %1165 = vmatpush1.bf16.msra.mxu0 0
        %1166 = vmatprep.subr.bf16.mxu0 0
        %1167 = vmatpush1.bf16.msra.mxu0 0
        %1168 = vmatprep.subr.bf16.mxu0 0
        %1169 = vmatpush1.bf16.msra.mxu0 0
        %1170 = vmatprep.subr.bf16.mxu0 0
        %1171 = vmatpush1.bf16.msra.mxu0 0
        %1172 = vmatprep.subr.bf16.mxu0 0
        %1173 = vmatpush1.bf16.msra.mxu0 0
        %1174 = vmatprep.subr.bf16.mxu0 0
        %1175 = vmatpush1.bf16.msra.mxu0 0
        %1176 = vmatprep.subr.bf16.mxu0 0
        %1177 = vmatpush1.bf16.msra.mxu0 0
        %1178 = vmatprep.mubr.bf16.mxu0 0
        %1179 = vmatmul.mubr.bf16.gmra.mrb[0].mxu0 %v1141
        %v1180 = vpop.f32.mrb[0].mxu0
        %v1181 = vadd.f32 0.0, %v1180
        %v1182 = vpop.f32.mrb[0].mxu0
        %v1183 = vpop.f32.mrb[0].mxu0
        %v1184 = vpop.f32.mrb[0].mxu0
        %1185 = vdwg.mxu0
        %1187 = vrot.lane.b32.xlu0 %v1181, 24
        %v1188 = vpop.permute.xlu0 %1187
        %vm1190 = vcmask 261312
        %1191 = vst.msk [vmem:[#allocation4] sm:$0xff] %vm1190, %v1188
        %v1192 = vld [vmem:[#allocation4] sm:$0xff]
        %1193 = vst.msk [vmem:[%s497] sm:$0xff] %vm674, %v1192
        %s1194 = sand.u32 %s263, 1
        %s1195 = scalar_lea.sflag [#allocation7], %s1194
        %s1196 = sand.u32 %s263, 1
        %s1197 = smul.addr %s1196, 8
        %s1198 = scalar_lea.vmem [#allocation14], %s1197
        %s1199 = sand.u32 %s291, 1
        %s1200 = scalar_lea.sflag [#allocation16], %s1199
        %s1201 = sand.u32 %s291, 1
        %s1202 = smul.addr %s1201, 16
        %s1203 = scalar_lea.vmem [#allocation15], %s1202
        // Predicated region
        $region81: #{tpu_custom_call.1} parent=55 // pred_check
          %p1204 = pneg %p273
        $region82: #{tpu_custom_call.1} parent=55 // pred_check_branch
          %1206 = sbr.rel (%p1204) target = $region84
        $region83: #{tpu_custom_call.1} parent=55 // pred_region
          %s1208 = ssub.s32 128, 128
          %1209 = vsyncadd %s1195, %s1208
          %s1210 = sadd.s32 %s40, %s39
          %s1211 = smul.addr %s1210, 128
          %s1212 = scalar_lea.hbm %s9, %s1211
          %s1214 = sshll.u32 %s1198, 4
          %s1215 = int_to_ptr.vmem [resolvable:$true] %s1214
          %1217 = dma.vmem_to_hbm [thread:$0]  %s1215, 128, %s1212, %s1195
        $region84: #{tpu_custom_call.1} parent=55 // pred_fallthru
          _
        // Predicated region
        $region85: #{tpu_custom_call.1} parent=55 // pred_check
          %p1218 = pneg %p301
        $region86: #{tpu_custom_call.1} parent=55 // pred_check_branch
          %1220 = sbr.rel (%p1218) target = $region88
        $region87: #{tpu_custom_call.1} parent=55 // pred_region
          %s1222 = ssub.s32 256, 256
          %1223 = vsyncadd %s1200, %s1222
          %s1224 = smul.addr %s39, 4
          %s1225 = sadd.s32 %s40, %s1224
          %s1226 = smul.addr %s1225, 64
          %s1227 = scalar_lea.hbm %s10, %s1226
          %s1228 = sshll.u32 %s1203, 4
          %s1229 = int_to_ptr.vmem [resolvable:$true] %s1228
          %1234 = dma.vmem_to_hbm [thread:$0]  %s1229, 256, %s1227, %s1200, 64, 64, 4
        $region88: #{tpu_custom_call.1} parent=55 // pred_fallthru
          _
      $region56: #{tpu_custom_call.1} parent=5 // pred_fallthru
        _
      %p1235 = scmp.le.s32.totalorder 2, %s30
      // Predicated region
      $region89: #{tpu_custom_call.1} parent=5 // pred_check
        %p1236 = pneg %p1235
      $region90: #{tpu_custom_call.1} parent=5 // pred_check_branch
        %1238 = sbr.rel (%p1236) target = $region92
      $region91: #{tpu_custom_call.1} parent=5 // pred_region
        %s1239 = ssub.s32 %s30, 2
        // Predicated region
        $region93: #{tpu_custom_call.1} parent=91 // pred_check
          %p1240 = pneg %p279
        $region94: #{tpu_custom_call.1} parent=91 // pred_check_branch
          %1242 = sbr.rel (%p1240) target = $region96
        $region95: #{tpu_custom_call.1} parent=91 // pred_region
          %s1243 = sand.u32 %s264, 1
          %s1244 = scalar_lea.sflag [#allocation7], %s1243
          %s1245 = sand.u32 %s264, 1
          %s1246 = smul.addr %s1245, 8
          %s1247 = scalar_lea.vmem [#allocation14], %s1246
          %1248 = dma.done %s1244, 128
        $region96: #{tpu_custom_call.1} parent=91 // pred_fallthru
          _
        // Predicated region
        $region97: #{tpu_custom_call.1} parent=91 // pred_check
          %p1249 = pneg %p307
        $region98: #{tpu_custom_call.1} parent=91 // pred_check_branch
          %1251 = sbr.rel (%p1249) target = $region100
        $region99: #{tpu_custom_call.1} parent=91 // pred_region
          %s1252 = sand.u32 %s292, 1
          %s1253 = scalar_lea.sflag [#allocation16], %s1252
          %s1254 = sand.u32 %s292, 1
          %s1255 = smul.addr %s1254, 16
          %s1256 = scalar_lea.vmem [#allocation15], %s1255
          %1257 = dma.done %s1253, 256
        $region100: #{tpu_custom_call.1} parent=91 // pred_fallthru
          _
      $region92: #{tpu_custom_call.1} parent=5 // pred_fallthru
        _
    $region6: #{tpu_custom_call.1} parent=1 // loop_footer
      %s34 = sadd.s32 1, %s30
    $region7: #{tpu_custom_call.1} parent=1 // loop_footer_branch
      %29 = sbr.rel target = $region3
    $region8: #{tpu_custom_call.1} parent=1 // loop_exit
      _
    %1258 = vsyncpa [#allocation6], 1
    %s1259 = scalar_lea.sflag [#allocation6], 1
    %1260 = vsyncpa %s1259, 1
    %1261 = vsyncpa [#allocation9], 1
    %s1262 = scalar_lea.sflag [#allocation9], 1
    %1263 = vsyncpa %s1262, 1
    %1264 = vsyncpa [#allocation12], 1
    %1265 = vsyncpa [#allocation7], 1
    %s1266 = scalar_lea.sflag [#allocation7], 1
    %1267 = vsyncpa %s1266, 1
    %1268 = vsyncpa [#allocation16], 1
    %s1269 = scalar_lea.sflag [#allocation16], 1
    %1270 = vsyncpa %s1269, 1

</llo_original>
